<compile_context>
chip_gen: v6e
topology: v6e:2x2x1
jax: 0.10.0
libtpu: 0.0.40
codegen_flags: <defaults>
</compile_context>

<pallas_src>
from functools import partial

import numpy as np
import jax
import jax.numpy as jnp
from jax.experimental import pallas as pl
from jax.experimental.pallas import tpu as pltpu


def _vmem():
    return pl.BlockSpec(memory_space=pltpu.MemorySpace.VMEM)


def _round_up8(x):
    return ((x + 7) // 8) * 8


def _slab_layout(H, hid_dim, op_len, extra_num):
    """Row offsets of every parameter inside the [rows, 4H] param slab.
    Every section starts on an 8-row (sublane aligned) boundary."""
    lay = {}
    r = 0
    for name, rows in (("whh1", H), ("whh2", H), ("wih2_h", hid_dim),
                       ("wih2_op", op_len), ("wih2_ex", extra_num),
                       ("mlp_w", H), ("vecs", 8)):
        lay[name] = r
        r = _round_up8(r + rows)
    lay["rows"] = r
    return lay


# single-row entries inside the 8-row "vecs" block of the slab
_VEC_B1, _VEC_B2, _VEC_MLP_B, _VEC_BN1G, _VEC_BN1B, _VEC_BN2G, _VEC_BN2B = range(7)


def pack_params(params, *, num_cond, cond_dim, hidden_dim, hid_dim,
                op_len, extra_num):
    """One-time host-side packing of all parameters into two DMA slabs."""
    H = hidden_dim
    H4 = 4 * H
    lay = _slab_layout(H, hid_dim, op_len, extra_num)

    # Block-diagonal lstm1 input projection: timestep t lives in rows
    # t*cond_dim:(t+1)*cond_dim and lanes t*4H:(t+1)*4H.
    wih1 = np.asarray(params["lstm1_wih"], np.float32)
    w1big = np.zeros((num_cond * cond_dim, num_cond * H4), np.float32)
    for t in range(num_cond):
        w1big[t * cond_dim:(t + 1) * cond_dim, t * H4:(t + 1) * H4] = wih1

    slab = np.zeros((lay["rows"], H4), np.float32)
    slab[lay["whh1"]:lay["whh1"] + H, :] = np.asarray(params["lstm1_whh"])
    slab[lay["whh2"]:lay["whh2"] + H, :] = np.asarray(params["lstm2_whh"])
    wih2 = np.asarray(params["lstm2_wih"], np.float32)
    slab[lay["wih2_op"]:lay["wih2_op"] + op_len, :] = wih2[:op_len]
    slab[lay["wih2_ex"]:lay["wih2_ex"] + extra_num, :] = wih2[op_len:op_len + extra_num]
    slab[lay["wih2_h"]:lay["wih2_h"] + hid_dim, :] = wih2[op_len + extra_num:]
    slab[lay["mlp_w"]:lay["mlp_w"] + H, :hid_dim] = np.asarray(params["mlp_w"])
    v = lay["vecs"]
    slab[v + _VEC_B1, :] = np.asarray(params["lstm1_b"]).reshape(-1)
    slab[v + _VEC_B2, :] = np.asarray(params["lstm2_b"]).reshape(-1)
    slab[v + _VEC_MLP_B, :hid_dim] = np.asarray(params["mlp_b"]).reshape(-1)
    slab[v + _VEC_BN1G, :hid_dim] = np.asarray(params["bn1_gamma"]).reshape(-1)
    slab[v + _VEC_BN1B, :hid_dim] = np.asarray(params["bn1_beta"]).reshape(-1)
    slab[v + _VEC_BN2G, :H] = np.asarray(params["bn2_gamma"]).reshape(-1)
    slab[v + _VEC_BN2B, :H] = np.asarray(params["bn2_beta"]).reshape(-1)
    return jnp.asarray(w1big), jnp.asarray(slab)


# ------------------------------------------------------ fused forward kernel --
def _e2e_fused_kernel(x1_ref, ops_ref, ext_ref, map_ref, w1big_ref, slab_ref,
                      o_ref, *, T, num_level, num_node, H, hid_dim, op_len,
                      extra_num, batch_size, lay):
    N1 = num_level * num_node
    H4 = 4 * H
    f32 = jnp.float32

    def band_consts(rows):
        # One EUP pass for every gate:
        #   i, f, o: sigmoid(x) = 0.5*tanh(0.5*x) + 0.5  -> scale 0.5, offset 0.5
        #   g      : tanh(x)                              -> scale 1.0, offset 0.0
        col = jax.lax.broadcasted_iota(jnp.int32, (rows, H4), 1)
        g_band = (col >= 2 * H) & (col < 3 * H)
        return jnp.where(g_band, 1.0, 0.5), jnp.where(g_band, 0.0, 0.5)

    def lstm_step(gates, c, sc, ofs):
        act = sc * jnp.tanh(sc * gates) + ofs
        i = act[:, 0:H]
        f = act[:, H:2 * H]
        g = act[:, 2 * H:3 * H]
        o = act[:, 3 * H:4 * H]
        c_new = f * c + i * g
        return o * jnp.tanh(c_new), c_new

    vecs = slab_ref[lay["vecs"]:lay["vecs"] + 8, :]          # biases / BN params
    b1 = vecs[_VEC_B1:_VEC_B1 + 1, :]
    b2 = vecs[_VEC_B2:_VEC_B2 + 1, :]

    # ---- lstm1: x@W_ih for ALL timesteps in one MXU pass (block-diag W) ------
    sc1, of1 = band_consts(N1)
    whh1 = slab_ref[lay["whh1"]:lay["whh1"] + H, :]
    xw1 = jnp.dot(x1_ref[...], w1big_ref[...], preferred_element_type=f32)
    h = jnp.zeros((N1, H), f32)
    c = jnp.zeros((N1, H), f32)
    for t in range(T):                                        # static unroll
        gates = (xw1[:, t * H4:(t + 1) * H4] + b1
                 + jnp.dot(h, whh1, preferred_element_type=f32))
        h, c = lstm_step(gates, c, sc1, of1)

    # ---- condition_mlp + ReLU + batch_norm1 (training mode, biased var) ------
    mlp_w = slab_ref[lay["mlp_w"]:lay["mlp_w"] + H, 0:hid_dim]
    mlp_b = vecs[_VEC_MLP_B:_VEC_MLP_B + 1, 0:hid_dim]
    y = jnp.maximum(jnp.dot(h, mlp_w, preferred_element_type=f32) + mlp_b, 0.0)
    mean1 = jnp.mean(y, axis=0, keepdims=True)
    var1 = jnp.mean((y - mean1) * (y - mean1), axis=0, keepdims=True)
    g1 = vecs[_VEC_BN1G:_VEC_BN1G + 1, 0:hid_dim]
    be1 = vecs[_VEC_BN1B:_VEC_BN1B + 1, 0:hid_dim]
    h1 = (y - mean1) * jax.lax.rsqrt(var1 + 1e-5) * g1 + be1  # [N1, hid_dim], VMEM-resident

    # ---- lstm2 input projection for all levels; torch.cat(...) folded into
    #      three matmuls against row-blocks of lstm2's W_ih ---------------------
    wih2_op = slab_ref[lay["wih2_op"]:lay["wih2_op"] + op_len, :]
    wih2_ex = slab_ref[lay["wih2_ex"]:lay["wih2_ex"] + extra_num, :]
    wih2_h = slab_ref[lay["wih2_h"]:lay["wih2_h"] + hid_dim, :]
    xw2 = (jnp.dot(ops_ref[...], wih2_op, preferred_element_type=f32)
           + jnp.dot(ext_ref[...], wih2_ex, preferred_element_type=f32)
           + jnp.dot(h1, wih2_h, preferred_element_type=f32) + b2)   # [N1, 4H]

    # ---- lstm2 bottom-up tree recursion ---------------------------------------
    sc2, of2 = band_consts(num_node)
    whh2 = slab_ref[lay["whh2"]:lay["whh2"] + H, :]

    def cell2(xw_band, h_in, c_in):
        gates = xw_band + jnp.dot(h_in, whh2, preferred_element_type=f32)
        return lstm_step(gates, c_in, sc2, of2)

    lvl = num_level - 1
    h2, c2 = cell2(xw2[lvl * num_node:(lvl + 1) * num_node, :],
                   jnp.zeros((num_node, H), f32), jnp.zeros((num_node, H), f32))

    # Child gather built from raw int32 mapping: column c holds node c+1,
    # index 0 is the zero pad row (contributes nothing); always /2 as in torch.
    mall = map_ref[...]                                       # [(L)*N, 2] int32
    colp1 = jax.lax.broadcasted_iota(jnp.int32, (num_node, num_node), 1) + 1
    for idx in reversed(range(num_level - 1)):                # static unroll
        ml = mall[idx * num_node:(idx + 1) * num_node, 0:1]
        mr = mall[idx * num_node:(idx + 1) * num_node, 1:2]
        sel = (jnp.where(colp1 == ml, 0.5, 0.0)
               + jnp.where(colp1 == mr, 0.5, 0.0))            # [N, N]
        hc = jnp.dot(sel, jnp.concatenate([h2, c2], axis=1),
                     preferred_element_type=f32)              # one s@[h|c] matmul
        h2, c2 = cell2(xw2[idx * num_node:(idx + 1) * num_node, :],
                       hc[:, 0:H], hc[:, H:2 * H])

    # ---- batch_norm2 over the first batch_size rows; the only HBM store ------
    hb = h2[0:batch_size, :]
    mean2 = jnp.mean(hb, axis=0, keepdims=True)
    var2 = jnp.mean((hb - mean2) * (hb - mean2), axis=0, keepdims=True)
    g2 = vecs[_VEC_BN2G:_VEC_BN2G + 1, 0:H]
    be2 = vecs[_VEC_BN2B:_VEC_BN2B + 1, 0:H]
    o_ref[...] = (hb - mean2) * jax.lax.rsqrt(var2 + 1e-5) * g2 + be2


@partial(jax.jit, static_argnames=("batch_size", "hidden_dim", "hid_dim"))
def e2e_forward(operators, extra_infos, conditions, mapping, w1big, slab,
                batch_size, hidden_dim, hid_dim):
    num_level, num_node, num_cond, cond_dim = conditions.shape
    op_len = operators.shape[-1]
    extra_num = extra_infos.shape[-1]
    N1 = num_level * num_node
    lay = _slab_layout(hidden_dim, hid_dim, op_len, extra_num)

    # Contiguous (free) reshapes only — no transpose / concat / one_hot outside.
    x1 = conditions.reshape(N1, num_cond * cond_dim)
    ops = operators.reshape(N1, op_len)
    ext = extra_infos.reshape(N1, extra_num)
    map2 = mapping.reshape(N1, 2).astype(jnp.int32)

    kernel = partial(_e2e_fused_kernel, T=num_cond, num_level=num_level,
                     num_node=num_node, H=hidden_dim, hid_dim=hid_dim,
                     op_len=op_len, extra_num=extra_num, batch_size=batch_size,
                     lay=lay)
    return pl.pallas_call(
        kernel,
        out_shape=jax.ShapeDtypeStruct((batch_size, hidden_dim), jnp.float32),
        in_specs=[_vmem()] * 6,
        out_specs=_vmem(),
    )(x1, ops, ext, map2, w1big, slab)


# -------------------------------------------------- pure-JAX reference model --
def _reference_forward(operators, extra_infos, conditions, mapping, params,
                       batch_size, hidden_dim):
    """Pure-JAX mirror of the PyTorch forward (training-mode BatchNorm)."""
    f32 = jnp.float32
    num_level, num_node, num_cond, cond_dim = conditions.shape
    N1 = num_level * num_node
    H = hidden_dim
    hi = jax.lax.Precision.HIGHEST

    def lstm_step(x, h, c, wih, whh, b):
        gates = jnp.dot(x, wih, precision=hi) + jnp.dot(h, whh, precision=hi) + b
        i, f, g, o = jnp.split(gates, 4, axis=1)
        c = jax.nn.sigmoid(f) * c + jax.nn.sigmoid(i) * jnp.tanh(g)
        return jax.nn.sigmoid(o) * jnp.tanh(c), c

    x = conditions.reshape(N1, num_cond, cond_dim)
    h = jnp.zeros((N1, H), f32)
    c = jnp.zeros((N1, H), f32)
    for t in range(num_cond):
        h, c = lstm_step(x[:, t, :], h, c, params["lstm1_wih"],
                         params["lstm1_whh"], params["lstm1_b"])
    y = jax.nn.relu(jnp.dot(h, params["mlp_w"], precision=hi) + params["mlp_b"])
    mean = y.mean(0, keepdims=True)
    var = ((y - mean) ** 2).mean(0, keepdims=True)
    y = (y - mean) / jnp.sqrt(var + 1e-5) * params["bn1_gamma"] + params["bn1_beta"]

    out = jnp.concatenate(
        [operators, extra_infos, y.reshape(num_level, num_node, -1)], axis=2)
    h = jnp.zeros((num_node, H), f32)
    c = jnp.zeros((num_node, H), f32)
    h, c = lstm_step(out[num_level - 1], h, c, params["lstm2_wih"],
                     params["lstm2_whh"], params["lstm2_b"])
    for idx in reversed(range(num_level - 1)):
        ph = jnp.concatenate([jnp.zeros((1, H), f32), h], axis=0)
        pc = jnp.concatenate([jnp.zeros((1, H), f32), c], axis=0)
        ml = mapping[idx, :, 0]
        mr = mapping[idx, :, 1]
        h = (ph[ml] + ph[mr]) / 2
        c = (pc[ml] + pc[mr]) / 2
        h, c = lstm_step(out[idx], h, c, params["lstm2_wih"],
                         params["lstm2_whh"], params["lstm2_b"])
    hb = h[:batch_size]
    mean = hb.mean(0, keepdims=True)
    var = ((hb - mean) ** 2).mean(0, keepdims=True)
    return (hb - mean) / jnp.sqrt(var + 1e-5) * params["bn2_gamma"] + params["bn2_beta"]


# --------------------------------------------------------------------- main --
if __name__ == "__main__":
    # "ds_info.constants" — synthetic, small
    condition_op_dim = 16
    operator_len = 8
    extra_info_num = 4
    hidden_dim = 32
    hid_dim = 32
    num_level = 3
    num_node = 8            # nodes per level
    num_cond = 4            # conditions per node
    true_batch = 5          # first 5 nodes of level 0 are real

    key = jax.random.PRNGKey(0)
    keys = jax.random.split(key, 16)

    def uinit(k, shape, scale=0.1):
        return jax.random.uniform(k, shape, jnp.float32, -scale, scale)

    one_hot_dim = operator_len + extra_info_num
    params = {
        "lstm1_wih": uinit(keys[0], (condition_op_dim, 4 * hidden_dim)),
        "lstm1_whh": uinit(keys[1], (hidden_dim, 4 * hidden_dim)),
        "lstm1_b":   uinit(keys[2], (1, 4 * hidden_dim)),      # b_ih + b_hh folded
        "mlp_w":     uinit(keys[3], (hidden_dim, hid_dim)),
        "mlp_b":     uinit(keys[4], (1, hid_dim)),
        "lstm2_wih": uinit(keys[5], (one_hot_dim + hid_dim, 4 * hidden_dim)),
        "lstm2_whh": uinit(keys[6], (hidden_dim, 4 * hidden_dim)),
        "lstm2_b":   uinit(keys[7], (1, 4 * hidden_dim)),
        "bn1_gamma": jnp.ones((1, hid_dim), jnp.float32),
        "bn1_beta":  jnp.zeros((1, hid_dim), jnp.float32),
        "bn2_gamma": jnp.ones((1, hidden_dim), jnp.float32),
        "bn2_beta":  jnp.zeros((1, hidden_dim), jnp.float32),
    }

    # ---- synthetic batch -----------------------------------------------------
    conditions = jax.random.normal(
        keys[8], (num_level, num_node, num_cond, condition_op_dim), jnp.float32)
    op_idx = jax.random.randint(keys[9], (num_level, num_node), 0, operator_len)
    operators = jax.nn.one_hot(op_idx, operator_len, dtype=jnp.float32)
    mask = np.ones((num_level, num_node, 1), np.float32)
    mask[0, true_batch:, :] = 0.0                 # padded nodes at level 0
    operators = operators * jnp.asarray(mask)
    extra_infos = jax.random.normal(
        keys[10], (num_level, num_node, extra_info_num), jnp.float32)
    mapping = jax.random.randint(
        keys[11], (num_level, num_node, 2), 0, num_node + 1).astype(jnp.int32)

    # batch_size exactly as the PyTorch loop (host-side, data-dependent)
    ops0 = np.asarray(operators[0])
    batch_size = 0
    for i in range(ops0.shape[0]):
        if ops0[i].sum() != 0:
            batch_size += 1
        else:
            break
    # TODO(synk): the break-based batch_size scan is inherently host-side; it is
    # computed with numpy since it determines the (static) output shape.

    # ---- one-time host-side parameter packing (2 DMA slabs) -------------------
    w1big, slab = pack_params(
        params, num_cond=num_cond, cond_dim=condition_op_dim,
        hidden_dim=hidden_dim, hid_dim=hid_dim,
        op_len=operator_len, extra_num=extra_info_num)

    out = e2e_forward(operators, extra_infos, conditions, mapping, w1big, slab,
                      batch_size=batch_size, hidden_dim=hidden_dim,
                      hid_dim=hid_dim)
    out = jax.block_until_ready(out)
    assert out.shape == (batch_size, hidden_dim)
    assert bool(jnp.all(jnp.isfinite(out)))

    # correctness check against a pure-JAX mirror of the PyTorch forward
    ref = _reference_forward(operators, extra_infos, conditions, mapping, params,
                             batch_size, hidden_dim)
    np.testing.assert_allclose(np.asarray(out), np.asarray(ref),
                               rtol=2e-2, atol=2e-2)
    print("KERNEL_OK")
</pallas_src>

<mosaic_0001>
module attributes {stable_mosaic.version = 11 : i64} {
  func.func @_e2e_fused_kernel(%arg0: memref<24x64xf32, #tpu.memory_space<vmem>>, %arg1: memref<24x8xf32, #tpu.memory_space<vmem>>, %arg2: memref<24x4xf32, #tpu.memory_space<vmem>>, %arg3: memref<24x2xi32, #tpu.memory_space<vmem>>, %arg4: memref<64x512xf32, #tpu.memory_space<vmem>>, %arg5: memref<152x128xf32, #tpu.memory_space<vmem>>, %arg6: memref<5x32xf32, #tpu.memory_space<vmem>>) attributes {dimension_semantics = [], scalar_prefetch = 0 : i64, scratch_operands = 0 : i64, tpu.core_type = #tpu.core_type<tc>} {
    %c144 = arith.constant 144 : index
    %c0 = arith.constant 0 : index
    %0 = vector.load %arg5[%c144, %c0] : memref<152x128xf32, #tpu.memory_space<vmem>>, vector<8x128xf32>
    %1 = vector.extract_strided_slice %0 {offsets = [0, 0], sizes = [1, 128], strides = [1, 1]} : vector<8x128xf32> to vector<1x128xf32>
    %2 = vector.extract_strided_slice %0 {offsets = [1, 0], sizes = [1, 128], strides = [1, 1]} : vector<8x128xf32> to vector<1x128xf32>
    %3 = tpu.iota {dimensions = array<i32: 1>} : vector<24x128xi32>
    %c64_i32 = arith.constant 64 : i32
    %4 = vector.broadcast %c64_i32 : i32 to vector<24x128xi32>
    %5 = arith.cmpi sge, %3, %4 : vector<24x128xi32>
    %c96_i32 = arith.constant 96 : i32
    %6 = vector.broadcast %c96_i32 : i32 to vector<24x128xi32>
    %7 = arith.cmpi slt, %3, %6 : vector<24x128xi32>
    %8 = arith.andi %5, %7 : vector<24x128xi1>
    %cst = arith.constant 1.000000e+00 : f32
    %cst_0 = arith.constant 5.000000e-01 : f32
    %9 = vector.broadcast %cst : f32 to vector<24x128xf32>
    %10 = vector.broadcast %cst_0 : f32 to vector<24x128xf32>
    %11 = arith.select %8, %9, %10 : vector<24x128xi1>, vector<24x128xf32>
    %cst_1 = arith.constant 0.000000e+00 : f32
    %cst_2 = arith.constant 5.000000e-01 : f32
    %12 = vector.broadcast %cst_1 : f32 to vector<24x128xf32>
    %13 = vector.broadcast %cst_2 : f32 to vector<24x128xf32>
    %14 = arith.select %8, %12, %13 : vector<24x128xi1>, vector<24x128xf32>
    %c0_3 = arith.constant 0 : index
    %c0_4 = arith.constant 0 : index
    %15 = vector.load %arg5[%c0_3, %c0_4] : memref<152x128xf32, #tpu.memory_space<vmem>>, vector<32x128xf32>
    %c0_5 = arith.constant 0 : index
    %c0_6 = arith.constant 0 : index
    %16 = vector.load %arg0[%c0_5, %c0_6] : memref<24x64xf32, #tpu.memory_space<vmem>>, vector<24x64xf32>
    %c0_7 = arith.constant 0 : index
    %c0_8 = arith.constant 0 : index
    %17 = vector.load %arg4[%c0_7, %c0_8] : memref<64x512xf32, #tpu.memory_space<vmem>>, vector<64x512xf32>
    %cst_9 = arith.constant dense<0.000000e+00> : vector<24x512xf32>
    %18 = tpu.matmul %16, %17, %cst_9 {dimension_numbers = #tpu.dot_dimension_numbers<[1], [0], [0], [1], [0, 0, 1, 1], [], []>} : vector<24x64xf32>, vector<64x512xf32>, vector<24x512xf32> -> vector<24x512xf32>
    %cst_10 = arith.constant 0.000000e+00 : f32
    %19 = vector.broadcast %cst_10 : f32 to vector<24x32xf32>
    %cst_11 = arith.constant 0.000000e+00 : f32
    %20 = vector.broadcast %cst_11 : f32 to vector<24x32xf32>
    %21 = vector.extract_strided_slice %18 {offsets = [0, 0], sizes = [24, 128], strides = [1, 1]} : vector<24x512xf32> to vector<24x128xf32>
    %22 = vector.broadcast %1 : vector<1x128xf32> to vector<24x128xf32>
    %23 = arith.addf %21, %22 : vector<24x128xf32>
    %cst_12 = arith.constant dense<0.000000e+00> : vector<24x128xf32>
    %24 = tpu.matmul %19, %15, %cst_12 {dimension_numbers = #tpu.dot_dimension_numbers<[1], [0], [0], [1], [0, 0, 1, 1], [], []>} : vector<24x32xf32>, vector<32x128xf32>, vector<24x128xf32> -> vector<24x128xf32>
    %25 = arith.addf %23, %24 : vector<24x128xf32>
    %26 = arith.mulf %11, %25 : vector<24x128xf32>
    %27 = math.tanh %26 : vector<24x128xf32>
    %28 = arith.mulf %11, %27 : vector<24x128xf32>
    %29 = arith.addf %28, %14 : vector<24x128xf32>
    %30 = vector.extract_strided_slice %29 {offsets = [0, 0], sizes = [24, 32], strides = [1, 1]} : vector<24x128xf32> to vector<24x32xf32>
    %31 = vector.extract_strided_slice %29 {offsets = [0, 32], sizes = [24, 32], strides = [1, 1]} : vector<24x128xf32> to vector<24x32xf32>
    %32 = vector.extract_strided_slice %29 {offsets = [0, 64], sizes = [24, 32], strides = [1, 1]} : vector<24x128xf32> to vector<24x32xf32>
    %33 = vector.extract_strided_slice %29 {offsets = [0, 96], sizes = [24, 32], strides = [1, 1]} : vector<24x128xf32> to vector<24x32xf32>
    %34 = arith.mulf %31, %20 : vector<24x32xf32>
    %35 = arith.mulf %30, %32 : vector<24x32xf32>
    %36 = arith.addf %34, %35 : vector<24x32xf32>
    %37 = math.tanh %36 : vector<24x32xf32>
    %38 = arith.mulf %33, %37 : vector<24x32xf32>
    %39 = vector.extract_strided_slice %18 {offsets = [0, 128], sizes = [24, 128], strides = [1, 1]} : vector<24x512xf32> to vector<24x128xf32>
    %40 = vector.broadcast %1 : vector<1x128xf32> to vector<24x128xf32>
    %41 = arith.addf %39, %40 : vector<24x128xf32>
    %cst_13 = arith.constant dense<0.000000e+00> : vector<24x128xf32>
    %42 = tpu.matmul %38, %15, %cst_13 {dimension_numbers = #tpu.dot_dimension_numbers<[1], [0], [0], [1], [0, 0, 1, 1], [], []>} : vector<24x32xf32>, vector<32x128xf32>, vector<24x128xf32> -> vector<24x128xf32>
    %43 = arith.addf %41, %42 : vector<24x128xf32>
    %44 = arith.mulf %11, %43 : vector<24x128xf32>
    %45 = math.tanh %44 : vector<24x128xf32>
    %46 = arith.mulf %11, %45 : vector<24x128xf32>
    %47 = arith.addf %46, %14 : vector<24x128xf32>
    %48 = vector.extract_strided_slice %47 {offsets = [0, 0], sizes = [24, 32], strides = [1, 1]} : vector<24x128xf32> to vector<24x32xf32>
    %49 = vector.extract_strided_slice %47 {offsets = [0, 32], sizes = [24, 32], strides = [1, 1]} : vector<24x128xf32> to vector<24x32xf32>
    %50 = vector.extract_strided_slice %47 {offsets = [0, 64], sizes = [24, 32], strides = [1, 1]} : vector<24x128xf32> to vector<24x32xf32>
    %51 = vector.extract_strided_slice %47 {offsets = [0, 96], sizes = [24, 32], strides = [1, 1]} : vector<24x128xf32> to vector<24x32xf32>
    %52 = arith.mulf %49, %36 : vector<24x32xf32>
    %53 = arith.mulf %48, %50 : vector<24x32xf32>
    %54 = arith.addf %52, %53 : vector<24x32xf32>
    %55 = math.tanh %54 : vector<24x32xf32>
    %56 = arith.mulf %51, %55 : vector<24x32xf32>
    %57 = vector.extract_strided_slice %18 {offsets = [0, 256], sizes = [24, 128], strides = [1, 1]} : vector<24x512xf32> to vector<24x128xf32>
    %58 = vector.broadcast %1 : vector<1x128xf32> to vector<24x128xf32>
    %59 = arith.addf %57, %58 : vector<24x128xf32>
    %cst_14 = arith.constant dense<0.000000e+00> : vector<24x128xf32>
    %60 = tpu.matmul %56, %15, %cst_14 {dimension_numbers = #tpu.dot_dimension_numbers<[1], [0], [0], [1], [0, 0, 1, 1], [], []>} : vector<24x32xf32>, vector<32x128xf32>, vector<24x128xf32> -> vector<24x128xf32>
    %61 = arith.addf %59, %60 : vector<24x128xf32>
    %62 = arith.mulf %11, %61 : vector<24x128xf32>
    %63 = math.tanh %62 : vector<24x128xf32>
    %64 = arith.mulf %11, %63 : vector<24x128xf32>
    %65 = arith.addf %64, %14 : vector<24x128xf32>
    %66 = vector.extract_strided_slice %65 {offsets = [0, 0], sizes = [24, 32], strides = [1, 1]} : vector<24x128xf32> to vector<24x32xf32>
    %67 = vector.extract_strided_slice %65 {offsets = [0, 32], sizes = [24, 32], strides = [1, 1]} : vector<24x128xf32> to vector<24x32xf32>
    %68 = vector.extract_strided_slice %65 {offsets = [0, 64], sizes = [24, 32], strides = [1, 1]} : vector<24x128xf32> to vector<24x32xf32>
    %69 = vector.extract_strided_slice %65 {offsets = [0, 96], sizes = [24, 32], strides = [1, 1]} : vector<24x128xf32> to vector<24x32xf32>
    %70 = arith.mulf %67, %54 : vector<24x32xf32>
    %71 = arith.mulf %66, %68 : vector<24x32xf32>
    %72 = arith.addf %70, %71 : vector<24x32xf32>
    %73 = math.tanh %72 : vector<24x32xf32>
    %74 = arith.mulf %69, %73 : vector<24x32xf32>
    %75 = vector.extract_strided_slice %18 {offsets = [0, 384], sizes = [24, 128], strides = [1, 1]} : vector<24x512xf32> to vector<24x128xf32>
    %76 = vector.broadcast %1 : vector<1x128xf32> to vector<24x128xf32>
    %77 = arith.addf %75, %76 : vector<24x128xf32>
    %cst_15 = arith.constant dense<0.000000e+00> : vector<24x128xf32>
    %78 = tpu.matmul %74, %15, %cst_15 {dimension_numbers = #tpu.dot_dimension_numbers<[1], [0], [0], [1], [0, 0, 1, 1], [], []>} : vector<24x32xf32>, vector<32x128xf32>, vector<24x128xf32> -> vector<24x128xf32>
    %79 = arith.addf %77, %78 : vector<24x128xf32>
    %80 = arith.mulf %11, %79 : vector<24x128xf32>
    %81 = math.tanh %80 : vector<24x128xf32>
    %82 = arith.mulf %11, %81 : vector<24x128xf32>
    %83 = arith.addf %82, %14 : vector<24x128xf32>
    %84 = vector.extract_strided_slice %83 {offsets = [0, 0], sizes = [24, 32], strides = [1, 1]} : vector<24x128xf32> to vector<24x32xf32>
    %85 = vector.extract_strided_slice %83 {offsets = [0, 32], sizes = [24, 32], strides = [1, 1]} : vector<24x128xf32> to vector<24x32xf32>
    %86 = vector.extract_strided_slice %83 {offsets = [0, 64], sizes = [24, 32], strides = [1, 1]} : vector<24x128xf32> to vector<24x32xf32>
    %87 = vector.extract_strided_slice %83 {offsets = [0, 96], sizes = [24, 32], strides = [1, 1]} : vector<24x128xf32> to vector<24x32xf32>
    %88 = arith.mulf %85, %72 : vector<24x32xf32>
    %89 = arith.mulf %84, %86 : vector<24x32xf32>
    %90 = arith.addf %88, %89 : vector<24x32xf32>
    %91 = math.tanh %90 : vector<24x32xf32>
    %92 = arith.mulf %87, %91 : vector<24x32xf32>
    %c112 = arith.constant 112 : index
    %c0_16 = arith.constant 0 : index
    %93 = vector.load %arg5[%c112, %c0_16] : memref<152x128xf32, #tpu.memory_space<vmem>>, vector<32x32xf32>
    %94 = vector.extract_strided_slice %0 {offsets = [2, 0], sizes = [1, 32], strides = [1, 1]} : vector<8x128xf32> to vector<1x32xf32>
    %cst_17 = arith.constant dense<0.000000e+00> : vector<24x32xf32>
    %95 = tpu.matmul %92, %93, %cst_17 {dimension_numbers = #tpu.dot_dimension_numbers<[1], [0], [0], [1], [0, 0, 1, 1], [], []>} : vector<24x32xf32>, vector<32x32xf32>, vector<24x32xf32> -> vector<24x32xf32>
    %96 = vector.broadcast %94 : vector<1x32xf32> to vector<24x32xf32>
    %97 = arith.addf %95, %96 : vector<24x32xf32>
    %cst_18 = arith.constant 0.000000e+00 : f32
    %98 = vector.broadcast %cst_18 : f32 to vector<24x32xf32>
    %99 = arith.maximumf %97, %98 : vector<24x32xf32>
    %cst_19 = arith.constant dense<0.000000e+00> : vector<32xf32>
    %100 = vector.multi_reduction <add>, %99, %cst_19 [0] : vector<24x32xf32> to vector<32xf32>
    %101 = vector.shape_cast %100 : vector<32xf32> to vector<1x32xf32>
    %cst_20 = arith.constant 2.400000e+01 : f32
    %102 = vector.broadcast %cst_20 : f32 to vector<1x32xf32>
    %103 = arith.divf %101, %102 : vector<1x32xf32>
    %104 = vector.broadcast %103 : vector<1x32xf32> to vector<24x32xf32>
    %105 = arith.subf %99, %104 : vector<24x32xf32>
    %106 = vector.broadcast %103 : vector<1x32xf32> to vector<24x32xf32>
    %107 = arith.subf %99, %106 : vector<24x32xf32>
    %108 = arith.mulf %105, %107 : vector<24x32xf32>
    %cst_21 = arith.constant dense<0.000000e+00> : vector<32xf32>
    %109 = vector.multi_reduction <add>, %108, %cst_21 [0] : vector<24x32xf32> to vector<32xf32>
    %110 = vector.shape_cast %109 : vector<32xf32> to vector<1x32xf32>
    %cst_22 = arith.constant 2.400000e+01 : f32
    %111 = vector.broadcast %cst_22 : f32 to vector<1x32xf32>
    %112 = arith.divf %110, %111 : vector<1x32xf32>
    %113 = vector.extract_strided_slice %0 {offsets = [3, 0], sizes = [1, 32], strides = [1, 1]} : vector<8x128xf32> to vector<1x32xf32>
    %114 = vector.extract_strided_slice %0 {offsets = [4, 0], sizes = [1, 32], strides = [1, 1]} : vector<8x128xf32> to vector<1x32xf32>
    %115 = vector.broadcast %103 : vector<1x32xf32> to vector<24x32xf32>
    %116 = arith.subf %99, %115 : vector<24x32xf32>
    %cst_23 = arith.constant 9.99999974E-6 : f32
    %117 = vector.broadcast %cst_23 : f32 to vector<1x32xf32>
    %118 = arith.addf %112, %117 : vector<1x32xf32>
    %119 = math.rsqrt %118 : vector<1x32xf32>
    %120 = vector.broadcast %119 : vector<1x32xf32> to vector<24x32xf32>
    %121 = arith.mulf %116, %120 : vector<24x32xf32>
    %122 = vector.broadcast %113 : vector<1x32xf32> to vector<24x32xf32>
    %123 = arith.mulf %121, %122 : vector<24x32xf32>
    %124 = vector.broadcast %114 : vector<1x32xf32> to vector<24x32xf32>
    %125 = arith.addf %123, %124 : vector<24x32xf32>
    %c96 = arith.constant 96 : index
    %c0_24 = arith.constant 0 : index
    %126 = vector.load %arg5[%c96, %c0_24] : memref<152x128xf32, #tpu.memory_space<vmem>>, vector<8x128xf32>
    %c104 = arith.constant 104 : index
    %c0_25 = arith.constant 0 : index
    %127 = vector.load %arg5[%c104, %c0_25] : memref<152x128xf32, #tpu.memory_space<vmem>>, vector<4x128xf32>
    %c64 = arith.constant 64 : index
    %c0_26 = arith.constant 0 : index
    %128 = vector.load %arg5[%c64, %c0_26] : memref<152x128xf32, #tpu.memory_space<vmem>>, vector<32x128xf32>
    %c0_27 = arith.constant 0 : index
    %c0_28 = arith.constant 0 : index
    %129 = vector.load %arg1[%c0_27, %c0_28] : memref<24x8xf32, #tpu.memory_space<vmem>>, vector<24x8xf32>
    %cst_29 = arith.constant dense<0.000000e+00> : vector<24x128xf32>
    %130 = tpu.matmul %129, %126, %cst_29 {dimension_numbers = #tpu.dot_dimension_numbers<[1], [0], [0], [1], [0, 0, 1, 1], [], []>} : vector<24x8xf32>, vector<8x128xf32>, vector<24x128xf32> -> vector<24x128xf32>
    %c0_30 = arith.constant 0 : index
    %c0_31 = arith.constant 0 : index
    %131 = vector.load %arg2[%c0_30, %c0_31] : memref<24x4xf32, #tpu.memory_space<vmem>>, vector<24x4xf32>
    %cst_32 = arith.constant dense<0.000000e+00> : vector<24x128xf32>
    %132 = tpu.matmul %131, %127, %cst_32 {dimension_numbers = #tpu.dot_dimension_numbers<[1], [0], [0], [1], [0, 0, 1, 1], [], []>} : vector<24x4xf32>, vector<4x128xf32>, vector<24x128xf32> -> vector<24x128xf32>
    %133 = arith.addf %130, %132 : vector<24x128xf32>
    %cst_33 = arith.constant dense<0.000000e+00> : vector<24x128xf32>
    %134 = tpu.matmul %125, %128, %cst_33 {dimension_numbers = #tpu.dot_dimension_numbers<[1], [0], [0], [1], [0, 0, 1, 1], [], []>} : vector<24x32xf32>, vector<32x128xf32>, vector<24x128xf32> -> vector<24x128xf32>
    %135 = arith.addf %133, %134 : vector<24x128xf32>
    %136 = vector.broadcast %2 : vector<1x128xf32> to vector<24x128xf32>
    %137 = arith.addf %135, %136 : vector<24x128xf32>
    %138 = tpu.iota {dimensions = array<i32: 1>} : vector<8x128xi32>
    %c64_i32_34 = arith.constant 64 : i32
    %139 = vector.broadcast %c64_i32_34 : i32 to vector<8x128xi32>
    %140 = arith.cmpi sge, %138, %139 : vector<8x128xi32>
    %c96_i32_35 = arith.constant 96 : i32
    %141 = vector.broadcast %c96_i32_35 : i32 to vector<8x128xi32>
    %142 = arith.cmpi slt, %138, %141 : vector<8x128xi32>
    %143 = arith.andi %140, %142 : vector<8x128xi1>
    %cst_36 = arith.constant 1.000000e+00 : f32
    %cst_37 = arith.constant 5.000000e-01 : f32
    %144 = vector.broadcast %cst_36 : f32 to vector<8x128xf32>
    %145 = vector.broadcast %cst_37 : f32 to vector<8x128xf32>
    %146 = arith.select %143, %144, %145 : vector<8x128xi1>, vector<8x128xf32>
    %cst_38 = arith.constant 0.000000e+00 : f32
    %cst_39 = arith.constant 5.000000e-01 : f32
    %147 = vector.broadcast %cst_38 : f32 to vector<8x128xf32>
    %148 = vector.broadcast %cst_39 : f32 to vector<8x128xf32>
    %149 = arith.select %143, %147, %148 : vector<8x128xi1>, vector<8x128xf32>
    %c32 = arith.constant 32 : index
    %c0_40 = arith.constant 0 : index
    %150 = vector.load %arg5[%c32, %c0_40] : memref<152x128xf32, #tpu.memory_space<vmem>>, vector<32x128xf32>
    %151 = vector.extract_strided_slice %137 {offsets = [16, 0], sizes = [8, 128], strides = [1, 1]} : vector<24x128xf32> to vector<8x128xf32>
    %cst_41 = arith.constant 0.000000e+00 : f32
    %152 = vector.broadcast %cst_41 : f32 to vector<8x32xf32>
    %cst_42 = arith.constant 0.000000e+00 : f32
    %153 = vector.broadcast %cst_42 : f32 to vector<8x32xf32>
    %cst_43 = arith.constant dense<0.000000e+00> : vector<8x128xf32>
    %154 = tpu.matmul %152, %150, %cst_43 {dimension_numbers = #tpu.dot_dimension_numbers<[1], [0], [0], [1], [0, 0, 1, 1], [], []>} : vector<8x32xf32>, vector<32x128xf32>, vector<8x128xf32> -> vector<8x128xf32>
    %155 = arith.addf %151, %154 : vector<8x128xf32>
    %156 = arith.mulf %146, %155 : vector<8x128xf32>
    %157 = math.tanh %156 : vector<8x128xf32>
    %158 = arith.mulf %146, %157 : vector<8x128xf32>
    %159 = arith.addf %158, %149 : vector<8x128xf32>
    %160 = vector.extract_strided_slice %159 {offsets = [0, 0], sizes = [8, 32], strides = [1, 1]} : vector<8x128xf32> to vector<8x32xf32>
    %161 = vector.extract_strided_slice %159 {offsets = [0, 32], sizes = [8, 32], strides = [1, 1]} : vector<8x128xf32> to vector<8x32xf32>
    %162 = vector.extract_strided_slice %159 {offsets = [0, 64], sizes = [8, 32], strides = [1, 1]} : vector<8x128xf32> to vector<8x32xf32>
    %163 = vector.extract_strided_slice %159 {offsets = [0, 96], sizes = [8, 32], strides = [1, 1]} : vector<8x128xf32> to vector<8x32xf32>
    %164 = arith.mulf %161, %153 : vector<8x32xf32>
    %165 = arith.mulf %160, %162 : vector<8x32xf32>
    %166 = arith.addf %164, %165 : vector<8x32xf32>
    %167 = math.tanh %166 : vector<8x32xf32>
    %168 = arith.mulf %163, %167 : vector<8x32xf32>
    %c0_44 = arith.constant 0 : index
    %c0_45 = arith.constant 0 : index
    %169 = vector.load %arg3[%c0_44, %c0_45] : memref<24x2xi32, #tpu.memory_space<vmem>>, vector<24x2xi32>
    %170 = tpu.iota {dimensions = array<i32: 1>} : vector<8x8xi32>
    %c1_i32 = arith.constant 1 : i32
    %171 = vector.broadcast %c1_i32 : i32 to vector<8x8xi32>
    %172 = arith.addi %170, %171 : vector<8x8xi32>
    %173 = vector.extract_strided_slice %169 {offsets = [8, 0], sizes = [8, 1], strides = [1, 1]} : vector<24x2xi32> to vector<8x1xi32>
    %174 = vector.extract_strided_slice %169 {offsets = [8, 1], sizes = [8, 1], strides = [1, 1]} : vector<24x2xi32> to vector<8x1xi32>
    %175 = vector.broadcast %173 : vector<8x1xi32> to vector<8x8xi32>
    %176 = arith.cmpi eq, %172, %175 : vector<8x8xi32>
    %cst_46 = arith.constant 5.000000e-01 : f32
    %cst_47 = arith.constant 0.000000e+00 : f32
    %177 = vector.broadcast %cst_46 : f32 to vector<8x8xf32>
    %178 = vector.broadcast %cst_47 : f32 to vector<8x8xf32>
    %179 = arith.select %176, %177, %178 : vector<8x8xi1>, vector<8x8xf32>
    %180 = vector.broadcast %174 : vector<8x1xi32> to vector<8x8xi32>
    %181 = arith.cmpi eq, %172, %180 : vector<8x8xi32>
    %cst_48 = arith.constant 5.000000e-01 : f32
    %cst_49 = arith.constant 0.000000e+00 : f32
    %182 = vector.broadcast %cst_48 : f32 to vector<8x8xf32>
    %183 = vector.broadcast %cst_49 : f32 to vector<8x8xf32>
    %184 = arith.select %181, %182, %183 : vector<8x8xi1>, vector<8x8xf32>
    %185 = arith.addf %179, %184 : vector<8x8xf32>
    %186 = tpu.concatenate %168, %166 in 1 : vector<8x32xf32>, vector<8x32xf32> -> vector<8x64xf32>
    %cst_50 = arith.constant dense<0.000000e+00> : vector<8x64xf32>
    %187 = tpu.matmul %185, %186, %cst_50 {dimension_numbers = #tpu.dot_dimension_numbers<[1], [0], [0], [1], [0, 0, 1, 1], [], []>} : vector<8x8xf32>, vector<8x64xf32>, vector<8x64xf32> -> vector<8x64xf32>
    %188 = vector.extract_strided_slice %137 {offsets = [8, 0], sizes = [8, 128], strides = [1, 1]} : vector<24x128xf32> to vector<8x128xf32>
    %189 = vector.extract_strided_slice %187 {offsets = [0, 0], sizes = [8, 32], strides = [1, 1]} : vector<8x64xf32> to vector<8x32xf32>
    %190 = vector.extract_strided_slice %187 {offsets = [0, 32], sizes = [8, 32], strides = [1, 1]} : vector<8x64xf32> to vector<8x32xf32>
    %cst_51 = arith.constant dense<0.000000e+00> : vector<8x128xf32>
    %191 = tpu.matmul %189, %150, %cst_51 {dimension_numbers = #tpu.dot_dimension_numbers<[1], [0], [0], [1], [0, 0, 1, 1], [], []>} : vector<8x32xf32>, vector<32x128xf32>, vector<8x128xf32> -> vector<8x128xf32>
    %192 = arith.addf %188, %191 : vector<8x128xf32>
    %193 = arith.mulf %146, %192 : vector<8x128xf32>
    %194 = math.tanh %193 : vector<8x128xf32>
    %195 = arith.mulf %146, %194 : vector<8x128xf32>
    %196 = arith.addf %195, %149 : vector<8x128xf32>
    %197 = vector.extract_strided_slice %196 {offsets = [0, 0], sizes = [8, 32], strides = [1, 1]} : vector<8x128xf32> to vector<8x32xf32>
    %198 = vector.extract_strided_slice %196 {offsets = [0, 32], sizes = [8, 32], strides = [1, 1]} : vector<8x128xf32> to vector<8x32xf32>
    %199 = vector.extract_strided_slice %196 {offsets = [0, 64], sizes = [8, 32], strides = [1, 1]} : vector<8x128xf32> to vector<8x32xf32>
    %200 = vector.extract_strided_slice %196 {offsets = [0, 96], sizes = [8, 32], strides = [1, 1]} : vector<8x128xf32> to vector<8x32xf32>
    %201 = arith.mulf %198, %190 : vector<8x32xf32>
    %202 = arith.mulf %197, %199 : vector<8x32xf32>
    %203 = arith.addf %201, %202 : vector<8x32xf32>
    %204 = math.tanh %203 : vector<8x32xf32>
    %205 = arith.mulf %200, %204 : vector<8x32xf32>
    %206 = vector.extract_strided_slice %169 {offsets = [0, 0], sizes = [8, 1], strides = [1, 1]} : vector<24x2xi32> to vector<8x1xi32>
    %207 = vector.extract_strided_slice %169 {offsets = [0, 1], sizes = [8, 1], strides = [1, 1]} : vector<24x2xi32> to vector<8x1xi32>
    %208 = vector.broadcast %206 : vector<8x1xi32> to vector<8x8xi32>
    %209 = arith.cmpi eq, %172, %208 : vector<8x8xi32>
    %cst_52 = arith.constant 5.000000e-01 : f32
    %cst_53 = arith.constant 0.000000e+00 : f32
    %210 = vector.broadcast %cst_52 : f32 to vector<8x8xf32>
    %211 = vector.broadcast %cst_53 : f32 to vector<8x8xf32>
    %212 = arith.select %209, %210, %211 : vector<8x8xi1>, vector<8x8xf32>
    %213 = vector.broadcast %207 : vector<8x1xi32> to vector<8x8xi32>
    %214 = arith.cmpi eq, %172, %213 : vector<8x8xi32>
    %cst_54 = arith.constant 5.000000e-01 : f32
    %cst_55 = arith.constant 0.000000e+00 : f32
    %215 = vector.broadcast %cst_54 : f32 to vector<8x8xf32>
    %216 = vector.broadcast %cst_55 : f32 to vector<8x8xf32>
    %217 = arith.select %214, %215, %216 : vector<8x8xi1>, vector<8x8xf32>
    %218 = arith.addf %212, %217 : vector<8x8xf32>
    %219 = tpu.concatenate %205, %203 in 1 : vector<8x32xf32>, vector<8x32xf32> -> vector<8x64xf32>
    %cst_56 = arith.constant dense<0.000000e+00> : vector<8x64xf32>
    %220 = tpu.matmul %218, %219, %cst_56 {dimension_numbers = #tpu.dot_dimension_numbers<[1], [0], [0], [1], [0, 0, 1, 1], [], []>} : vector<8x8xf32>, vector<8x64xf32>, vector<8x64xf32> -> vector<8x64xf32>
    %221 = vector.extract_strided_slice %137 {offsets = [0, 0], sizes = [8, 128], strides = [1, 1]} : vector<24x128xf32> to vector<8x128xf32>
    %222 = vector.extract_strided_slice %220 {offsets = [0, 0], sizes = [8, 32], strides = [1, 1]} : vector<8x64xf32> to vector<8x32xf32>
    %223 = vector.extract_strided_slice %220 {offsets = [0, 32], sizes = [8, 32], strides = [1, 1]} : vector<8x64xf32> to vector<8x32xf32>
    %cst_57 = arith.constant dense<0.000000e+00> : vector<8x128xf32>
    %224 = tpu.matmul %222, %150, %cst_57 {dimension_numbers = #tpu.dot_dimension_numbers<[1], [0], [0], [1], [0, 0, 1, 1], [], []>} : vector<8x32xf32>, vector<32x128xf32>, vector<8x128xf32> -> vector<8x128xf32>
    %225 = arith.addf %221, %224 : vector<8x128xf32>
    %226 = arith.mulf %146, %225 : vector<8x128xf32>
    %227 = math.tanh %226 : vector<8x128xf32>
    %228 = arith.mulf %146, %227 : vector<8x128xf32>
    %229 = arith.addf %228, %149 : vector<8x128xf32>
    %230 = vector.extract_strided_slice %229 {offsets = [0, 0], sizes = [8, 32], strides = [1, 1]} : vector<8x128xf32> to vector<8x32xf32>
    %231 = vector.extract_strided_slice %229 {offsets = [0, 32], sizes = [8, 32], strides = [1, 1]} : vector<8x128xf32> to vector<8x32xf32>
    %232 = vector.extract_strided_slice %229 {offsets = [0, 64], sizes = [8, 32], strides = [1, 1]} : vector<8x128xf32> to vector<8x32xf32>
    %233 = vector.extract_strided_slice %229 {offsets = [0, 96], sizes = [8, 32], strides = [1, 1]} : vector<8x128xf32> to vector<8x32xf32>
    %234 = arith.mulf %231, %223 : vector<8x32xf32>
    %235 = arith.mulf %230, %232 : vector<8x32xf32>
    %236 = arith.addf %234, %235 : vector<8x32xf32>
    %237 = math.tanh %236 : vector<8x32xf32>
    %238 = arith.mulf %233, %237 : vector<8x32xf32>
    %239 = vector.extract_strided_slice %238 {offsets = [0, 0], sizes = [5, 32], strides = [1, 1]} : vector<8x32xf32> to vector<5x32xf32>
    %cst_58 = arith.constant dense<0.000000e+00> : vector<32xf32>
    %240 = vector.multi_reduction <add>, %239, %cst_58 [0] : vector<5x32xf32> to vector<32xf32>
    %241 = vector.shape_cast %240 : vector<32xf32> to vector<1x32xf32>
    %cst_59 = arith.constant 5.000000e+00 : f32
    %242 = vector.broadcast %cst_59 : f32 to vector<1x32xf32>
    %243 = arith.divf %241, %242 : vector<1x32xf32>
    %244 = vector.broadcast %243 : vector<1x32xf32> to vector<5x32xf32>
    %245 = arith.subf %239, %244 : vector<5x32xf32>
    %246 = vector.broadcast %243 : vector<1x32xf32> to vector<5x32xf32>
    %247 = arith.subf %239, %246 : vector<5x32xf32>
    %248 = arith.mulf %245, %247 : vector<5x32xf32>
    %cst_60 = arith.constant dense<0.000000e+00> : vector<32xf32>
    %249 = vector.multi_reduction <add>, %248, %cst_60 [0] : vector<5x32xf32> to vector<32xf32>
    %250 = vector.shape_cast %249 : vector<32xf32> to vector<1x32xf32>
    %cst_61 = arith.constant 5.000000e+00 : f32
    %251 = vector.broadcast %cst_61 : f32 to vector<1x32xf32>
    %252 = arith.divf %250, %251 : vector<1x32xf32>
    %253 = vector.extract_strided_slice %0 {offsets = [5, 0], sizes = [1, 32], strides = [1, 1]} : vector<8x128xf32> to vector<1x32xf32>
    %254 = vector.extract_strided_slice %0 {offsets = [6, 0], sizes = [1, 32], strides = [1, 1]} : vector<8x128xf32> to vector<1x32xf32>
    %255 = vector.broadcast %243 : vector<1x32xf32> to vector<5x32xf32>
    %256 = arith.subf %239, %255 : vector<5x32xf32>
    %cst_62 = arith.constant 9.99999974E-6 : f32
    %257 = vector.broadcast %cst_62 : f32 to vector<1x32xf32>
    %258 = arith.addf %252, %257 : vector<1x32xf32>
    %259 = math.rsqrt %258 : vector<1x32xf32>
    %260 = vector.broadcast %259 : vector<1x32xf32> to vector<5x32xf32>
    %261 = arith.mulf %256, %260 : vector<5x32xf32>
    %262 = vector.broadcast %253 : vector<1x32xf32> to vector<5x32xf32>
    %263 = arith.mulf %261, %262 : vector<5x32xf32>
    %264 = vector.broadcast %254 : vector<1x32xf32> to vector<5x32xf32>
    %265 = arith.addf %263, %264 : vector<5x32xf32>
    %c0_63 = arith.constant 0 : index
    %c0_64 = arith.constant 0 : index
    %266 = vector.load %arg6[%c0_63, %c0_64] : memref<5x32xf32, #tpu.memory_space<vmem>>, vector<5x32xf32>
    tpu.vector_store %arg6[%c0_63, %c0_64], %265 {strides = array<i32>} : memref<5x32xf32, #tpu.memory_space<vmem>>, vector<5x32xf32>,
    return
  }
}

</mosaic_0001>

<llo_original>
// kernel: e2e_forward.1
$region0: #{e2e_forward.1}
  #allocation0 [shape = 'u32[]', space=smem, size = 0x4, offset = 0x4, fixed_abs, tag = 'smem constant byte address 0x4 - core index']
  #allocation1 [shape = 'u32[144,128]{1,0:T(1,128)}', space=vmem, size = 0x12000, scoped, tag = 'internal scratch']
  %s0 = inlined_call_operand.vmem [shape: f32[24,64], index: 0, kind: input, shape index: {}]
  %s1 = inlined_call_operand.vmem [shape: f32[24,8], index: 1, kind: input, shape index: {}]
  %s2 = inlined_call_operand.vmem [shape: f32[24,4], index: 2, kind: input, shape index: {}]
  %s3 = inlined_call_operand.vmem [shape: s32[24,2], index: 3, kind: input, shape index: {}]
  %s4 = inlined_call_operand.hbm [shape: f32[64,512], index: 4, kind: input, shape index: {}]
  %s5 = inlined_call_operand.vmem [shape: f32[152,128], index: 5, kind: input, shape index: {}]
  %s6 = inlined_call_operand.hbm [shape: f32[5,32], index: 6, kind: output, shape index: {}]
  %s7 = sld [smem:[#allocation0]]
  $region38: #{e2e_forward.1} parent=0
    _
  %s9 = ssub.s32 1, %s7
  %s10 = scalar_select 0, %s9, %s7
  $region1: #{e2e_forward.1} parent=0
    #allocation2 [shape = 'u8[131072]{0}', space=vmem, size = 0x20000, scoped, tag = 'input window, operand 4, single buffered']
    #allocation3 [shape = 's32[1]{0}', space=sflag, size = 0x4, scoped, tag = 'scoped memory for e2e_forward.1']
    #allocation4 [shape = 's32[1]{0}', space=sflag, size = 0x4, scoped, tag = 'scoped memory for e2e_forward.1']
    #allocation5 [shape = 'u8[4096]{0}', space=vmem, size = 0x1000, scoped, tag = 'output window, operand 0, single buffered']
    %11 = vsyncpa [#allocation3], 0
    %12 = vsyncpa [#allocation4], 0
    // Predicated region
    $region2: #{e2e_forward.1} parent=1 // pred_check
      _
    $region3: #{e2e_forward.1} parent=1 // pred_check_branch
      %14 = sbr.rel (0) target = $region5
    $region4: #{e2e_forward.1} parent=1 // pred_region
      _
    $region5: #{e2e_forward.1} parent=1 // pred_fallthru
      _
    // Predicated region
    $region6: #{e2e_forward.1} parent=1 // pred_check
      _
    $region7: #{e2e_forward.1} parent=1 // pred_check_branch
      %16 = sbr.rel (0) target = $region9
    $region8: #{e2e_forward.1} parent=1 // pred_region
      _
    $region9: #{e2e_forward.1} parent=1 // pred_fallthru
      _
    // Predicated region
    $region10: #{e2e_forward.1} parent=1 // pred_check
      _
    $region11: #{e2e_forward.1} parent=1 // pred_check_branch
      %18 = sbr.rel (0) target = $region13
    $region12: #{e2e_forward.1} parent=1 // pred_region
      _
    $region13: #{e2e_forward.1} parent=1 // pred_fallthru
      _
    // Predicated region
    $region14: #{e2e_forward.1} parent=1 // pred_check
      _
    $region15: #{e2e_forward.1} parent=1 // pred_check_branch
      %20 = sbr.rel (0) target = $region17
    $region16: #{e2e_forward.1} parent=1 // pred_region
      _
    $region17: #{e2e_forward.1} parent=1 // pred_fallthru
      _
    // Predicated region
    $region18: #{e2e_forward.1} parent=1 // pred_check
      _
    $region19: #{e2e_forward.1} parent=1 // pred_check_branch
      %22 = sbr.rel (0) target = $region21
    $region20: #{e2e_forward.1} parent=1 // pred_region
      %s24 = ssub.s32 4096, 4096
      %25 = vsyncadd [#allocation3], %s24
      %s26 = sshll.u32 [#allocation2], 4
      %s27 = int_to_ptr.vmem [resolvable:$true] %s26
      %32 = dma.hbm_to_vmem [thread:$0]  %s4, 4096, %s27, [#allocation3], 512, 512, 32
    $region21: #{e2e_forward.1} parent=1 // pred_fallthru
      _
    // Predicated region
    $region22: #{e2e_forward.1} parent=1 // pred_check
      _
    $region23: #{e2e_forward.1} parent=1 // pred_check_branch
      %34 = sbr.rel (0) target = $region25
    $region24: #{e2e_forward.1} parent=1 // pred_region
      _
    $region25: #{e2e_forward.1} parent=1 // pred_fallthru
      _
    // Predicated region
    $region26: #{e2e_forward.1} parent=1 // pred_check
      _
    $region27: #{e2e_forward.1} parent=1 // pred_check_branch
      %36 = sbr.rel (0) target = $region29
    $region28: #{e2e_forward.1} parent=1 // pred_region
      %37 = dma.done [#allocation3], 4096
    $region29: #{e2e_forward.1} parent=1 // pred_fallthru
      _
    %v38 = vld [vmem:[%s5 + $0x90] sm:$0xff]
    %v39 = vlaneseq
    %v40 = vand.u32 %v39, 127
    %vm41 = vcmp.ge.s32.totalorder %v40, 64
    %vm42 = vcmp.lt.s32.totalorder %v40, 96
    %vm43 = vmand %vm41, %vm42
    %v44 = vsel %vm43, 1.0, 0.5
    %v45 = vsel %vm43, 0.0, 0.5
    %v46 = vld [vmem:[%s5] sm:$0xff]
    %v47 = vld [vmem:[%s5 + $0x8] sm:$0xff]
    %v48 = vld [vmem:[%s5 + $0x10] sm:$0xff]
    %v49 = vld [vmem:[%s5 + $0x18] sm:$0xff]
    %v50 = vld [vmem:[%s0] sm:$0xff]
    %v51 = vld [vmem:[%s0 + $0x8] sm:$0xff]
    %v52 = vld [vmem:[%s0 + $0x10] sm:$0xff]
    %v53 = vld [vmem:[#allocation2] sm:$0xff]
    %v54 = vld [vmem:[#allocation2 + $0x8] sm:$0xff]
    %v55 = vld [vmem:[#allocation2 + $0x10] sm:$0xff]
    %v56 = vld [vmem:[#allocation2 + $0x18] sm:$0xff]
    %v57 = vld [vmem:[#allocation2 + $0x20] sm:$0xff]
    %v58 = vld [vmem:[#allocation2 + $0x28] sm:$0xff]
    %v59 = vld [vmem:[#allocation2 + $0x30] sm:$0xff]
    %v60 = vld [vmem:[#allocation2 + $0x38] sm:$0xff]
    %v61 = vld [vmem:[#allocation2 + $0x40] sm:$0xff]
    %v62 = vld [vmem:[#allocation2 + $0x48] sm:$0xff]
    %v63 = vld [vmem:[#allocation2 + $0x50] sm:$0xff]
    %v64 = vld [vmem:[#allocation2 + $0x58] sm:$0xff]
    %v65 = vld [vmem:[#allocation2 + $0x60] sm:$0xff]
    %v66 = vld [vmem:[#allocation2 + $0x68] sm:$0xff]
    %v67 = vld [vmem:[#allocation2 + $0x70] sm:$0xff]
    %v68 = vld [vmem:[#allocation2 + $0x78] sm:$0xff]
    %v69 = vld [vmem:[#allocation2 + $0x80] sm:$0xff]
    %v70 = vld [vmem:[#allocation2 + $0x88] sm:$0xff]
    %v71 = vld [vmem:[#allocation2 + $0x90] sm:$0xff]
    %v72 = vld [vmem:[#allocation2 + $0x98] sm:$0xff]
    %v73 = vld [vmem:[#allocation2 + $0xa0] sm:$0xff]
    %v74 = vld [vmem:[#allocation2 + $0xa8] sm:$0xff]
    %v75 = vld [vmem:[#allocation2 + $0xb0] sm:$0xff]
    %v76 = vld [vmem:[#allocation2 + $0xb8] sm:$0xff]
    %v77 = vld [vmem:[#allocation2 + $0xc0] sm:$0xff]
    %v78 = vld [vmem:[#allocation2 + $0xc8] sm:$0xff]
    %v79 = vld [vmem:[#allocation2 + $0xd0] sm:$0xff]
    %v80 = vld [vmem:[#allocation2 + $0xd8] sm:$0xff]
    %v81 = vld [vmem:[#allocation2 + $0xe0] sm:$0xff]
    %v82 = vld [vmem:[#allocation2 + $0xe8] sm:$0xff]
    %v83 = vld [vmem:[#allocation2 + $0xf0] sm:$0xff]
    %v84 = vld [vmem:[#allocation2 + $0xf8] sm:$0xff]
    %vm85 = vcmask 523264
    %v87 = vsel %vm85, %v50, 0
    %v90 = vsel %vm85, %v51, 0
    %v93 = vsel %vm85, %v52, 0
    %95 = vmatprep.subr.mxu0 0.0
    %96 = vmatpush1.msra.mxu0 0.0
    %97 = vmatprep.subr.mxu0 0.0
    %98 = vmatpush1.msra.mxu0 0.0
    %99 = vmatprep.subr.mxu0 0.0
    %100 = vmatpush1.msra.mxu0 0.0
    %101 = vmatprep.subr.mxu0 0.0
    %102 = vmatpush1.msra.mxu0 0.0
    %103 = vmatprep.subr.mxu0 0.0
    %104 = vmatpush1.msra.mxu0 0.0
    %105 = vmatprep.subr.mxu0 0.0
    %106 = vmatpush1.msra.mxu0 0.0
    %107 = vmatprep.subr.mxu0 0.0
    %108 = vmatpush1.msra.mxu0 0.0
    %109 = vmatprep.subr.mxu0 0.0
    %110 = vmatpush1.msra.mxu0 0.0
    %111 = vmatprep.subr.mxu0 %v82
    %112 = vmatpush1.msra.mxu0 %v81
    %113 = vmatprep.subr.mxu0 %v78
    %114 = vmatpush1.msra.mxu0 %v77
    %115 = vmatprep.subr.mxu0 %v74
    %116 = vmatpush1.msra.mxu0 %v73
    %117 = vmatprep.subr.mxu0 %v70
    %118 = vmatpush1.msra.mxu0 %v69
    %119 = vmatprep.subr.mxu0 %v66
    %120 = vmatpush1.msra.mxu0 %v65
    %121 = vmatprep.subr.mxu0 %v62
    %122 = vmatpush1.msra.mxu0 %v61
    %123 = vmatprep.subr.mxu0 %v58
    %124 = vmatpush1.msra.mxu0 %v57
    %125 = vmatprep.subr.mxu0 %v54
    %126 = vmatpush1.msra.mxu0 %v53
    %127 = vmatprep.subr.mxu0 0.0
    %128 = vmatpush2.msra.mxu0 0.0
    %129 = vmatprep.subr.mxu0 0.0
    %130 = vmatpush2.msra.mxu0 0.0
    %131 = vmatprep.subr.mxu0 0.0
    %132 = vmatpush2.msra.mxu0 0.0
    %133 = vmatprep.subr.mxu0 0.0
    %134 = vmatpush2.msra.mxu0 0.0
    %135 = vmatprep.subr.mxu0 0.0
    %136 = vmatpush2.msra.mxu0 0.0
    %137 = vmatprep.subr.mxu0 0.0
    %138 = vmatpush2.msra.mxu0 0.0
    %139 = vmatprep.subr.mxu0 0.0
    %140 = vmatpush2.msra.mxu0 0.0
    %141 = vmatprep.subr.mxu0 0.0
    %142 = vmatpush2.msra.mxu0 0.0
    %143 = vmatprep.subr.mxu0 0.0
    %144 = vmatpush2.msra.mxu0 0.0
    %145 = vmatprep.subr.mxu0 0.0
    %146 = vmatpush2.msra.mxu0 0.0
    %147 = vmatprep.subr.mxu0 0.0
    %148 = vmatpush2.msra.mxu0 0.0
    %149 = vmatprep.subr.mxu0 0.0
    %150 = vmatpush2.msra.mxu0 0.0
    %151 = vmatprep.subr.mxu0 0.0
    %152 = vmatpush2.msra.mxu0 0.0
    %153 = vmatprep.subr.mxu0 0.0
    %154 = vmatpush2.msra.mxu0 0.0
    %155 = vmatprep.subr.mxu0 0.0
    %156 = vmatpush2.msra.mxu0 0.0
    %157 = vmatprep.subr.mxu0 0.0
    %158 = vmatpush2.msra.mxu0 0.0
    %159 = vmatprep.mubr.f32.mxu0 0.0
    %160 = vmatmul.mubr.f32.gmra.mxu0 %v87
    %v161 = vpop.f32.mrf.mxu0
    %v162 = vadd.f32 0.0, %v161
    %v163 = vpop.f32.mrf.mxu0
    %v164 = vadd.f32 0.0, %v163
    %165 = vmatprep.mubr.f32.mxu0 0.0
    %166 = vmatmul.mubr.f32.gmra.mxu0 %v90
    %v167 = vpop.f32.mrf.mxu0
    %v168 = vadd.f32 0.0, %v167
    %v169 = vpop.f32.mrf.mxu0
    %v170 = vadd.f32 0.0, %v169
    %171 = vmatprep.mubr.f32.mxu0 0.0
    %172 = vmatmul.mubr.f32.gmra.mxu0 %v93
    %v173 = vpop.f32.mrf.mxu0
    %v174 = vadd.f32 0.0, %v173
    %v175 = vpop.f32.mrf.mxu0
    %v176 = vadd.f32 0.0, %v175
    %177 = vdwg.mxu0
    %178 = vmatprep.subr.mxu0 0.0
    %179 = vmatpush1.msra.mxu0 0.0
    %180 = vmatprep.subr.mxu0 0.0
    %181 = vmatpush1.msra.mxu0 0.0
    %182 = vmatprep.subr.mxu0 0.0
    %183 = vmatpush1.msra.mxu0 0.0
    %184 = vmatprep.subr.mxu0 0.0
    %185 = vmatpush1.msra.mxu0 0.0
    %186 = vmatprep.subr.mxu0 0.0
    %187 = vmatpush1.msra.mxu0 0.0
    %188 = vmatprep.subr.mxu0 0.0
    %189 = vmatpush1.msra.mxu0 0.0
    %190 = vmatprep.subr.mxu0 0.0
    %191 = vmatpush1.msra.mxu0 0.0
    %192 = vmatprep.subr.mxu0 0.0
    %193 = vmatpush1.msra.mxu0 0.0
    %194 = vmatprep.subr.mxu0 %v84
    %195 = vmatpush1.msra.mxu0 %v83
    %196 = vmatprep.subr.mxu0 %v80
    %197 = vmatpush1.msra.mxu0 %v79
    %198 = vmatprep.subr.mxu0 %v76
    %199 = vmatpush1.msra.mxu0 %v75
    %200 = vmatprep.subr.mxu0 %v72
    %201 = vmatpush1.msra.mxu0 %v71
    %202 = vmatprep.subr.mxu0 %v68
    %203 = vmatpush1.msra.mxu0 %v67
    %204 = vmatprep.subr.mxu0 %v64
    %205 = vmatpush1.msra.mxu0 %v63
    %206 = vmatprep.subr.mxu0 %v60
    %207 = vmatpush1.msra.mxu0 %v59
    %208 = vmatprep.subr.mxu0 %v56
    %209 = vmatpush1.msra.mxu0 %v55
    %210 = vmatprep.subr.mxu0 0.0
    %211 = vmatpush2.msra.mxu0 0.0
    %212 = vmatprep.subr.mxu0 0.0
    %213 = vmatpush2.msra.mxu0 0.0
    %214 = vmatprep.subr.mxu0 0.0
    %215 = vmatpush2.msra.mxu0 0.0
    %216 = vmatprep.subr.mxu0 0.0
    %217 = vmatpush2.msra.mxu0 0.0
    %218 = vmatprep.subr.mxu0 0.0
    %219 = vmatpush2.msra.mxu0 0.0
    %220 = vmatprep.subr.mxu0 0.0
    %221 = vmatpush2.msra.mxu0 0.0
    %222 = vmatprep.subr.mxu0 0.0
    %223 = vmatpush2.msra.mxu0 0.0
    %224 = vmatprep.subr.mxu0 0.0
    %225 = vmatpush2.msra.mxu0 0.0
    %226 = vmatprep.subr.mxu0 0.0
    %227 = vmatpush2.msra.mxu0 0.0
    %228 = vmatprep.subr.mxu0 0.0
    %229 = vmatpush2.msra.mxu0 0.0
    %230 = vmatprep.subr.mxu0 0.0
    %231 = vmatpush2.msra.mxu0 0.0
    %232 = vmatprep.subr.mxu0 0.0
    %233 = vmatpush2.msra.mxu0 0.0
    %234 = vmatprep.subr.mxu0 0.0
    %235 = vmatpush2.msra.mxu0 0.0
    %236 = vmatprep.subr.mxu0 0.0
    %237 = vmatpush2.msra.mxu0 0.0
    %238 = vmatprep.subr.mxu0 0.0
    %239 = vmatpush2.msra.mxu0 0.0
    %240 = vmatprep.subr.mxu0 0.0
    %241 = vmatpush2.msra.mxu0 0.0
    %242 = vmatprep.mubr.f32.mxu0 0.0
    %243 = vmatmul.mubr.f32.gmra.mxu0 %v87
    %v244 = vpop.f32.mrf.mxu0
    %v245 = vadd.f32 0.0, %v244
    %v246 = vpop.f32.mrf.mxu0
    %v247 = vadd.f32 0.0, %v246
    %248 = vmatprep.mubr.f32.mxu0 0.0
    %249 = vmatmul.mubr.f32.gmra.mxu0 %v90
    %v250 = vpop.f32.mrf.mxu0
    %v251 = vadd.f32 0.0, %v250
    %v252 = vpop.f32.mrf.mxu0
    %v253 = vadd.f32 0.0, %v252
    %254 = vmatprep.mubr.f32.mxu0 0.0
    %255 = vmatmul.mubr.f32.gmra.mxu0 %v93
    %v256 = vpop.f32.mrf.mxu0
    %v257 = vadd.f32 0.0, %v256
    %v258 = vpop.f32.mrf.mxu0
    %v259 = vadd.f32 0.0, %v258
    %260 = vdwg.mxu0
    %v261 = vlaneseq
    %v262 = vshrl.u32 %v261, 7
    %v263 = vsub.s32 0, %v262
    %v264 = vrot.slane %v38, %v263
    %v265 = vadd.f32 %v162, %v264
    %v266 = vadd.f32 %v168, %v264
    %v267 = vadd.f32 %v174, %v264
    %vm268 = vcmask 261120
    %v270 = vsel %vm268, 0.0, 0
    %272 = vmatprep.subr.mxu0 0.0
    %273 = vmatpush1.msra.mxu0 0.0
    %274 = vmatprep.subr.mxu0 0.0
    %275 = vmatpush1.msra.mxu0 0.0
    %276 = vmatprep.subr.mxu0 0.0
    %277 = vmatpush1.msra.mxu0 0.0
    %278 = vmatprep.subr.mxu0 0.0
    %279 = vmatpush1.msra.mxu0 0.0
    %280 = vmatprep.subr.mxu0 0.0
    %281 = vmatpush1.msra.mxu0 0.0
    %282 = vmatprep.subr.mxu0 0.0
    %283 = vmatpush1.msra.mxu0 0.0
    %284 = vmatprep.subr.mxu0 0.0
    %285 = vmatpush1.msra.mxu0 0.0
    %286 = vmatprep.subr.mxu0 0.0
    %287 = vmatpush1.msra.mxu0 0.0
    %288 = vmatprep.subr.mxu0 0.0
    %289 = vmatpush1.msra.mxu0 0.0
    %290 = vmatprep.subr.mxu0 0.0
    %291 = vmatpush1.msra.mxu0 0.0
    %292 = vmatprep.subr.mxu0 0.0
    %293 = vmatpush1.msra.mxu0 0.0
    %294 = vmatprep.subr.mxu0 0.0
    %295 = vmatpush1.msra.mxu0 0.0
    %296 = vmatprep.subr.mxu0 0.0
    %297 = vmatpush1.msra.mxu0 %v49
    %298 = vmatprep.subr.mxu0 0.0
    %299 = vmatpush1.msra.mxu0 %v48
    %300 = vmatprep.subr.mxu0 0.0
    %301 = vmatpush1.msra.mxu0 %v47
    %302 = vmatprep.subr.mxu0 0.0
    %303 = vmatpush1.msra.mxu0 %v46
    %304 = vmatprep.subr.mxu0 0.0
    %305 = vmatpush2.msra.mxu0 0.0
    %306 = vmatprep.subr.mxu0 0.0
    %307 = vmatpush2.msra.mxu0 0.0
    %308 = vmatprep.subr.mxu0 0.0
    %309 = vmatpush2.msra.mxu0 0.0
    %310 = vmatprep.subr.mxu0 0.0
    %311 = vmatpush2.msra.mxu0 0.0
    %312 = vmatprep.subr.mxu0 0.0
    %313 = vmatpush2.msra.mxu0 0.0
    %314 = vmatprep.subr.mxu0 0.0
    %315 = vmatpush2.msra.mxu0 0.0
    %316 = vmatprep.subr.mxu0 0.0
    %317 = vmatpush2.msra.mxu0 0.0
    %318 = vmatprep.subr.mxu0 0.0
    %319 = vmatpush2.msra.mxu0 0.0
    %320 = vmatprep.subr.mxu0 0.0
    %321 = vmatpush2.msra.mxu0 0.0
    %322 = vmatprep.subr.mxu0 0.0
    %323 = vmatpush2.msra.mxu0 0.0
    %324 = vmatprep.subr.mxu0 0.0
    %325 = vmatpush2.msra.mxu0 0.0
    %326 = vmatprep.subr.mxu0 0.0
    %327 = vmatpush2.msra.mxu0 0.0
    %328 = vmatprep.subr.mxu0 0.0
    %329 = vmatpush2.msra.mxu0 0.0
    %330 = vmatprep.subr.mxu0 0.0
    %331 = vmatpush2.msra.mxu0 0.0
    %332 = vmatprep.subr.mxu0 0.0
    %333 = vmatpush2.msra.mxu0 0.0
    %334 = vmatprep.subr.mxu0 0.0
    %335 = vmatpush2.msra.mxu0 0.0
    %336 = vmatprep.mubr.f32.mxu0 0.0
    %337 = vmatmul.mubr.f32.gmra.mxu0 %v270
    %v338 = vpop.f32.mrf.mxu0
    %v339 = vadd.f32 0.0, %v338
    %v340 = vpop.f32.mrf.mxu0
    %341 = vmatprep.mubr.f32.mxu0 0.0
    %342 = vmatmul.mubr.f32.gmra.mxu0 %v270
    %v343 = vpop.f32.mrf.mxu0
    %v344 = vadd.f32 0.0, %v343
    %v345 = vpop.f32.mrf.mxu0
    %346 = vmatprep.mubr.f32.mxu0 0.0
    %347 = vmatmul.mubr.f32.gmra.mxu0 %v270
    %v348 = vpop.f32.mrf.mxu0
    %v349 = vadd.f32 0.0, %v348
    %v350 = vpop.f32.mrf.mxu0
    %351 = vdwg.mxu0
    %v352 = vadd.f32 %v265, %v339
    %v353 = vadd.f32 %v266, %v344
    %v354 = vadd.f32 %v267, %v349
    %v355 = vmul.f32 %v44, %v352
    %v356 = vmul.f32 %v44, %v353
    %v357 = vmul.f32 %v44, %v354
    %v358 = vtanh.pop %v355
    %v359 = vtanh.pop %v356
    %v360 = vtanh.pop %v357
    %v361 = vmul.f32 %v44, %v358
    %v362 = vmul.f32 %v44, %v359
    %v363 = vmul.f32 %v44, %v360
    %v364 = vadd.f32 %v361, %v45
    %v365 = vadd.f32 %v362, %v45
    %v366 = vadd.f32 %v363, %v45
    %v367 = vmul.f32 %v364, 0.0
    %v368 = vmul.f32 %v365, 0.0
    %v369 = vmul.f32 %v366, 0.0
    %373 = vrot.lane.b32.xlu0 %v364, 64
    %v374 = vpop.permute.xlu0 %373
    %375 = vrot.lane.b32.xlu0 %v365, 64
    %v376 = vpop.permute.xlu0 %375
    %377 = vrot.lane.b32.xlu0 %v366, 64
    %v378 = vpop.permute.xlu0 %377
    %v382 = vmul.f32 %v364, %v374
    %v383 = vmul.f32 %v365, %v376
    %v384 = vmul.f32 %v366, %v378
    %388 = vrot.lane.b32.xlu0 %v382, 32
    %v389 = vpop.permute.xlu0 %388
    %390 = vrot.lane.b32.xlu0 %v383, 32
    %v391 = vpop.permute.xlu0 %390
    %392 = vrot.lane.b32.xlu0 %v384, 32
    %v393 = vpop.permute.xlu0 %392
    %v397 = vadd.f32 %v367, %v389
    %v398 = vadd.f32 %v368, %v391
    %v399 = vadd.f32 %v369, %v393
    %v400 = vtanh.pop %v397
    %v401 = vtanh.pop %v398
    %v402 = vtanh.pop %v399
    %406 = vrot.lane.b32.xlu0 %v400, 64
    %v407 = vpop.permute.xlu0 %406
    %408 = vrot.lane.b32.xlu0 %v401, 64
    %v409 = vpop.permute.xlu0 %408
    %410 = vrot.lane.b32.xlu0 %v402, 64
    %v411 = vpop.permute.xlu0 %410
    %v415 = vmul.f32 %v364, %v407
    %v416 = vmul.f32 %v365, %v409
    %v417 = vmul.f32 %v366, %v411
    %v418 = vadd.f32 %v164, %v264
    %v419 = vadd.f32 %v170, %v264
    %v420 = vadd.f32 %v176, %v264
    %424 = vrot.lane.b32.xlu0 %v415, 32
    %v425 = vpop.permute.xlu0 %424
    %426 = vrot.lane.b32.xlu0 %v416, 32
    %v427 = vpop.permute.xlu0 %426
    %428 = vrot.lane.b32.xlu0 %v417, 32
    %v429 = vpop.permute.xlu0 %428
    %v430 = vsel %vm268, %v425, 0
    %v432 = vsel %vm268, %v427, 0
    %v434 = vsel %vm268, %v429, 0
    %436 = vmatprep.subr.mxu0 0.0
    %437 = vmatpush1.msra.mxu0 0.0
    %438 = vmatprep.subr.mxu0 0.0
    %439 = vmatpush1.msra.mxu0 0.0
    %440 = vmatprep.subr.mxu0 0.0
    %441 = vmatpush1.msra.mxu0 0.0
    %442 = vmatprep.subr.mxu0 0.0
    %443 = vmatpush1.msra.mxu0 0.0
    %444 = vmatprep.subr.mxu0 0.0
    %445 = vmatpush1.msra.mxu0 0.0
    %446 = vmatprep.subr.mxu0 0.0
    %447 = vmatpush1.msra.mxu0 0.0
    %448 = vmatprep.subr.mxu0 0.0
    %449 = vmatpush1.msra.mxu0 0.0
    %450 = vmatprep.subr.mxu0 0.0
    %451 = vmatpush1.msra.mxu0 0.0
    %452 = vmatprep.subr.mxu0 0.0
    %453 = vmatpush1.msra.mxu0 0.0
    %454 = vmatprep.subr.mxu0 0.0
    %455 = vmatpush1.msra.mxu0 0.0
    %456 = vmatprep.subr.mxu0 0.0
    %457 = vmatpush1.msra.mxu0 0.0
    %458 = vmatprep.subr.mxu0 0.0
    %459 = vmatpush1.msra.mxu0 0.0
    %460 = vmatprep.subr.mxu0 0.0
    %461 = vmatpush1.msra.mxu0 %v49
    %462 = vmatprep.subr.mxu0 0.0
    %463 = vmatpush1.msra.mxu0 %v48
    %464 = vmatprep.subr.mxu0 0.0
    %465 = vmatpush1.msra.mxu0 %v47
    %466 = vmatprep.subr.mxu0 0.0
    %467 = vmatpush1.msra.mxu0 %v46
    %468 = vmatprep.subr.mxu0 0.0
    %469 = vmatpush2.msra.mxu0 0.0
    %470 = vmatprep.subr.mxu0 0.0
    %471 = vmatpush2.msra.mxu0 0.0
    %472 = vmatprep.subr.mxu0 0.0
    %473 = vmatpush2.msra.mxu0 0.0
    %474 = vmatprep.subr.mxu0 0.0
    %475 = vmatpush2.msra.mxu0 0.0
    %476 = vmatprep.subr.mxu0 0.0
    %477 = vmatpush2.msra.mxu0 0.0
    %478 = vmatprep.subr.mxu0 0.0
    %479 = vmatpush2.msra.mxu0 0.0
    %480 = vmatprep.subr.mxu0 0.0
    %481 = vmatpush2.msra.mxu0 0.0
    %482 = vmatprep.subr.mxu0 0.0
    %483 = vmatpush2.msra.mxu0 0.0
    %484 = vmatprep.subr.mxu0 0.0
    %485 = vmatpush2.msra.mxu0 0.0
    %486 = vmatprep.subr.mxu0 0.0
    %487 = vmatpush2.msra.mxu0 0.0
    %488 = vmatprep.subr.mxu0 0.0
    %489 = vmatpush2.msra.mxu0 0.0
    %490 = vmatprep.subr.mxu0 0.0
    %491 = vmatpush2.msra.mxu0 0.0
    %492 = vmatprep.subr.mxu0 0.0
    %493 = vmatpush2.msra.mxu0 0.0
    %494 = vmatprep.subr.mxu0 0.0
    %495 = vmatpush2.msra.mxu0 0.0
    %496 = vmatprep.subr.mxu0 0.0
    %497 = vmatpush2.msra.mxu0 0.0
    %498 = vmatprep.subr.mxu0 0.0
    %499 = vmatpush2.msra.mxu0 0.0
    %500 = vmatprep.mubr.f32.mxu0 0.0
    %501 = vmatmul.mubr.f32.gmra.mxu0 %v430
    %v502 = vpop.f32.mrf.mxu0
    %v503 = vadd.f32 0.0, %v502
    %v504 = vpop.f32.mrf.mxu0
    %505 = vmatprep.mubr.f32.mxu0 0.0
    %506 = vmatmul.mubr.f32.gmra.mxu0 %v432
    %v507 = vpop.f32.mrf.mxu0
    %v508 = vadd.f32 0.0, %v507
    %v509 = vpop.f32.mrf.mxu0
    %510 = vmatprep.mubr.f32.mxu0 0.0
    %511 = vmatmul.mubr.f32.gmra.mxu0 %v434
    %v512 = vpop.f32.mrf.mxu0
    %v513 = vadd.f32 0.0, %v512
    %v514 = vpop.f32.mrf.mxu0
    %515 = vdwg.mxu0
    %v516 = vadd.f32 %v418, %v503
    %v517 = vadd.f32 %v419, %v508
    %v518 = vadd.f32 %v420, %v513
    %v519 = vmul.f32 %v44, %v516
    %v520 = vmul.f32 %v44, %v517
    %v521 = vmul.f32 %v44, %v518
    %v522 = vtanh.pop %v519
    %v523 = vtanh.pop %v520
    %v524 = vtanh.pop %v521
    %v525 = vmul.f32 %v44, %v522
    %v526 = vmul.f32 %v44, %v523
    %v527 = vmul.f32 %v44, %v524
    %v528 = vadd.f32 %v525, %v45
    %v529 = vadd.f32 %v526, %v45
    %v530 = vadd.f32 %v527, %v45
    %v531 = vmul.f32 %v528, %v397
    %v532 = vmul.f32 %v529, %v398
    %v533 = vmul.f32 %v530, %v399
    %537 = vrot.lane.b32.xlu0 %v528, 64
    %v538 = vpop.permute.xlu0 %537
    %539 = vrot.lane.b32.xlu0 %v529, 64
    %v540 = vpop.permute.xlu0 %539
    %541 = vrot.lane.b32.xlu0 %v530, 64
    %v542 = vpop.permute.xlu0 %541
    %v546 = vmul.f32 %v528, %v538
    %v547 = vmul.f32 %v529, %v540
    %v548 = vmul.f32 %v530, %v542
    %552 = vrot.lane.b32.xlu0 %v546, 32
    %v553 = vpop.permute.xlu0 %552
    %554 = vrot.lane.b32.xlu0 %v547, 32
    %v555 = vpop.permute.xlu0 %554
    %556 = vrot.lane.b32.xlu0 %v548, 32
    %v557 = vpop.permute.xlu0 %556
    %v561 = vadd.f32 %v531, %v553
    %v562 = vadd.f32 %v532, %v555
    %v563 = vadd.f32 %v533, %v557
    %v564 = vtanh.pop %v561
    %v565 = vtanh.pop %v562
    %v566 = vtanh.pop %v563
    %570 = vrot.lane.b32.xlu0 %v564, 64
    %v571 = vpop.permute.xlu0 %570
    %572 = vrot.lane.b32.xlu0 %v565, 64
    %v573 = vpop.permute.xlu0 %572
    %574 = vrot.lane.b32.xlu0 %v566, 64
    %v575 = vpop.permute.xlu0 %574
    %v579 = vmul.f32 %v528, %v571
    %v580 = vmul.f32 %v529, %v573
    %v581 = vmul.f32 %v530, %v575
    %v582 = vadd.f32 %v245, %v264
    %v583 = vadd.f32 %v251, %v264
    %v584 = vadd.f32 %v257, %v264
    %588 = vrot.lane.b32.xlu0 %v579, 32
    %v589 = vpop.permute.xlu0 %588
    %590 = vrot.lane.b32.xlu0 %v580, 32
    %v591 = vpop.permute.xlu0 %590
    %592 = vrot.lane.b32.xlu0 %v581, 32
    %v593 = vpop.permute.xlu0 %592
    %v594 = vsel %vm268, %v589, 0
    %v596 = vsel %vm268, %v591, 0
    %v598 = vsel %vm268, %v593, 0
    %600 = vmatprep.subr.mxu0 0.0
    %601 = vmatpush1.msra.mxu0 0.0
    %602 = vmatprep.subr.mxu0 0.0
    %603 = vmatpush1.msra.mxu0 0.0
    %604 = vmatprep.subr.mxu0 0.0
    %605 = vmatpush1.msra.mxu0 0.0
    %606 = vmatprep.subr.mxu0 0.0
    %607 = vmatpush1.msra.mxu0 0.0
    %608 = vmatprep.subr.mxu0 0.0
    %609 = vmatpush1.msra.mxu0 0.0
    %610 = vmatprep.subr.mxu0 0.0
    %611 = vmatpush1.msra.mxu0 0.0
    %612 = vmatprep.subr.mxu0 0.0
    %613 = vmatpush1.msra.mxu0 0.0
    %614 = vmatprep.subr.mxu0 0.0
    %615 = vmatpush1.msra.mxu0 0.0
    %616 = vmatprep.subr.mxu0 0.0
    %617 = vmatpush1.msra.mxu0 0.0
    %618 = vmatprep.subr.mxu0 0.0
    %619 = vmatpush1.msra.mxu0 0.0
    %620 = vmatprep.subr.mxu0 0.0
    %621 = vmatpush1.msra.mxu0 0.0
    %622 = vmatprep.subr.mxu0 0.0
    %623 = vmatpush1.msra.mxu0 0.0
    %624 = vmatprep.subr.mxu0 0.0
    %625 = vmatpush1.msra.mxu0 %v49
    %626 = vmatprep.subr.mxu0 0.0
    %627 = vmatpush1.msra.mxu0 %v48
    %628 = vmatprep.subr.mxu0 0.0
    %629 = vmatpush1.msra.mxu0 %v47
    %630 = vmatprep.subr.mxu0 0.0
    %631 = vmatpush1.msra.mxu0 %v46
    %632 = vmatprep.subr.mxu0 0.0
    %633 = vmatpush2.msra.mxu0 0.0
    %634 = vmatprep.subr.mxu0 0.0
    %635 = vmatpush2.msra.mxu0 0.0
    %636 = vmatprep.subr.mxu0 0.0
    %637 = vmatpush2.msra.mxu0 0.0
    %638 = vmatprep.subr.mxu0 0.0
    %639 = vmatpush2.msra.mxu0 0.0
    %640 = vmatprep.subr.mxu0 0.0
    %641 = vmatpush2.msra.mxu0 0.0
    %642 = vmatprep.subr.mxu0 0.0
    %643 = vmatpush2.msra.mxu0 0.0
    %644 = vmatprep.subr.mxu0 0.0
    %645 = vmatpush2.msra.mxu0 0.0
    %646 = vmatprep.subr.mxu0 0.0
    %647 = vmatpush2.msra.mxu0 0.0
    %648 = vmatprep.subr.mxu0 0.0
    %649 = vmatpush2.msra.mxu0 0.0
    %650 = vmatprep.subr.mxu0 0.0
    %651 = vmatpush2.msra.mxu0 0.0
    %652 = vmatprep.subr.mxu0 0.0
    %653 = vmatpush2.msra.mxu0 0.0
    %654 = vmatprep.subr.mxu0 0.0
    %655 = vmatpush2.msra.mxu0 0.0
    %656 = vmatprep.subr.mxu0 0.0
    %657 = vmatpush2.msra.mxu0 0.0
    %658 = vmatprep.subr.mxu0 0.0
    %659 = vmatpush2.msra.mxu0 0.0
    %660 = vmatprep.subr.mxu0 0.0
    %661 = vmatpush2.msra.mxu0 0.0
    %662 = vmatprep.subr.mxu0 0.0
    %663 = vmatpush2.msra.mxu0 0.0
    %664 = vmatprep.mubr.f32.mxu0 0.0
    %665 = vmatmul.mubr.f32.gmra.mxu0 %v594
    %v666 = vpop.f32.mrf.mxu0
    %v667 = vadd.f32 0.0, %v666
    %v668 = vpop.f32.mrf.mxu0
    %669 = vmatprep.mubr.f32.mxu0 0.0
    %670 = vmatmul.mubr.f32.gmra.mxu0 %v596
    %v671 = vpop.f32.mrf.mxu0
    %v672 = vadd.f32 0.0, %v671
    %v673 = vpop.f32.mrf.mxu0
    %674 = vmatprep.mubr.f32.mxu0 0.0
    %675 = vmatmul.mubr.f32.gmra.mxu0 %v598
    %v676 = vpop.f32.mrf.mxu0
    %v677 = vadd.f32 0.0, %v676
    %v678 = vpop.f32.mrf.mxu0
    %679 = vdwg.mxu0
    %v680 = vadd.f32 %v582, %v667
    %v681 = vadd.f32 %v583, %v672
    %v682 = vadd.f32 %v584, %v677
    %v683 = vmul.f32 %v44, %v680
    %v684 = vmul.f32 %v44, %v681
    %v685 = vmul.f32 %v44, %v682
    %v686 = vtanh.pop %v683
    %v687 = vtanh.pop %v684
    %v688 = vtanh.pop %v685
    %v689 = vmul.f32 %v44, %v686
    %v690 = vmul.f32 %v44, %v687
    %v691 = vmul.f32 %v44, %v688
    %v692 = vadd.f32 %v689, %v45
    %v693 = vadd.f32 %v690, %v45
    %v694 = vadd.f32 %v691, %v45
    %v695 = vmul.f32 %v692, %v561
    %v696 = vmul.f32 %v693, %v562
    %v697 = vmul.f32 %v694, %v563
    %701 = vrot.lane.b32.xlu0 %v692, 64
    %v702 = vpop.permute.xlu0 %701
    %703 = vrot.lane.b32.xlu0 %v693, 64
    %v704 = vpop.permute.xlu0 %703
    %705 = vrot.lane.b32.xlu0 %v694, 64
    %v706 = vpop.permute.xlu0 %705
    %v710 = vmul.f32 %v692, %v702
    %v711 = vmul.f32 %v693, %v704
    %v712 = vmul.f32 %v694, %v706
    %716 = vrot.lane.b32.xlu0 %v710, 32
    %v717 = vpop.permute.xlu0 %716
    %718 = vrot.lane.b32.xlu0 %v711, 32
    %v719 = vpop.permute.xlu0 %718
    %720 = vrot.lane.b32.xlu0 %v712, 32
    %v721 = vpop.permute.xlu0 %720
    %v725 = vadd.f32 %v695, %v717
    %v726 = vadd.f32 %v696, %v719
    %v727 = vadd.f32 %v697, %v721
    %v728 = vtanh.pop %v725
    %v729 = vtanh.pop %v726
    %v730 = vtanh.pop %v727
    %734 = vrot.lane.b32.xlu0 %v728, 64
    %v735 = vpop.permute.xlu0 %734
    %736 = vrot.lane.b32.xlu0 %v729, 64
    %v737 = vpop.permute.xlu0 %736
    %738 = vrot.lane.b32.xlu0 %v730, 64
    %v739 = vpop.permute.xlu0 %738
    %v743 = vmul.f32 %v692, %v735
    %v744 = vmul.f32 %v693, %v737
    %v745 = vmul.f32 %v694, %v739
    %v746 = vadd.f32 %v247, %v264
    %v747 = vadd.f32 %v253, %v264
    %v748 = vadd.f32 %v259, %v264
    %752 = vrot.lane.b32.xlu0 %v743, 32
    %v753 = vpop.permute.xlu0 %752
    %754 = vrot.lane.b32.xlu0 %v744, 32
    %v755 = vpop.permute.xlu0 %754
    %756 = vrot.lane.b32.xlu0 %v745, 32
    %v757 = vpop.permute.xlu0 %756
    %v758 = vsel %vm268, %v753, 0
    %v760 = vsel %vm268, %v755, 0
    %v762 = vsel %vm268, %v757, 0
    %764 = vmatprep.subr.mxu0 0.0
    %765 = vmatpush1.msra.mxu0 0.0
    %766 = vmatprep.subr.mxu0 0.0
    %767 = vmatpush1.msra.mxu0 0.0
    %768 = vmatprep.subr.mxu0 0.0
    %769 = vmatpush1.msra.mxu0 0.0
    %770 = vmatprep.subr.mxu0 0.0
    %771 = vmatpush1.msra.mxu0 0.0
    %772 = vmatprep.subr.mxu0 0.0
    %773 = vmatpush1.msra.mxu0 0.0
    %774 = vmatprep.subr.mxu0 0.0
    %775 = vmatpush1.msra.mxu0 0.0
    %776 = vmatprep.subr.mxu0 0.0
    %777 = vmatpush1.msra.mxu0 0.0
    %778 = vmatprep.subr.mxu0 0.0
    %779 = vmatpush1.msra.mxu0 0.0
    %780 = vmatprep.subr.mxu0 0.0
    %781 = vmatpush1.msra.mxu0 0.0
    %782 = vmatprep.subr.mxu0 0.0
    %783 = vmatpush1.msra.mxu0 0.0
    %784 = vmatprep.subr.mxu0 0.0
    %785 = vmatpush1.msra.mxu0 0.0
    %786 = vmatprep.subr.mxu0 0.0
    %787 = vmatpush1.msra.mxu0 0.0
    %788 = vmatprep.subr.mxu0 0.0
    %789 = vmatpush1.msra.mxu0 %v49
    %790 = vmatprep.subr.mxu0 0.0
    %791 = vmatpush1.msra.mxu0 %v48
    %792 = vmatprep.subr.mxu0 0.0
    %793 = vmatpush1.msra.mxu0 %v47
    %794 = vmatprep.subr.mxu0 0.0
    %795 = vmatpush1.msra.mxu0 %v46
    %796 = vmatprep.subr.mxu0 0.0
    %797 = vmatpush2.msra.mxu0 0.0
    %798 = vmatprep.subr.mxu0 0.0
    %799 = vmatpush2.msra.mxu0 0.0
    %800 = vmatprep.subr.mxu0 0.0
    %801 = vmatpush2.msra.mxu0 0.0
    %802 = vmatprep.subr.mxu0 0.0
    %803 = vmatpush2.msra.mxu0 0.0
    %804 = vmatprep.subr.mxu0 0.0
    %805 = vmatpush2.msra.mxu0 0.0
    %806 = vmatprep.subr.mxu0 0.0
    %807 = vmatpush2.msra.mxu0 0.0
    %808 = vmatprep.subr.mxu0 0.0
    %809 = vmatpush2.msra.mxu0 0.0
    %810 = vmatprep.subr.mxu0 0.0
    %811 = vmatpush2.msra.mxu0 0.0
    %812 = vmatprep.subr.mxu0 0.0
    %813 = vmatpush2.msra.mxu0 0.0
    %814 = vmatprep.subr.mxu0 0.0
    %815 = vmatpush2.msra.mxu0 0.0
    %816 = vmatprep.subr.mxu0 0.0
    %817 = vmatpush2.msra.mxu0 0.0
    %818 = vmatprep.subr.mxu0 0.0
    %819 = vmatpush2.msra.mxu0 0.0
    %820 = vmatprep.subr.mxu0 0.0
    %821 = vmatpush2.msra.mxu0 0.0
    %822 = vmatprep.subr.mxu0 0.0
    %823 = vmatpush2.msra.mxu0 0.0
    %824 = vmatprep.subr.mxu0 0.0
    %825 = vmatpush2.msra.mxu0 0.0
    %826 = vmatprep.subr.mxu0 0.0
    %827 = vmatpush2.msra.mxu0 0.0
    %828 = vmatprep.mubr.f32.mxu0 0.0
    %829 = vmatmul.mubr.f32.gmra.mxu0 %v758
    %v830 = vpop.f32.mrf.mxu0
    %v831 = vadd.f32 0.0, %v830
    %v832 = vpop.f32.mrf.mxu0
    %833 = vmatprep.mubr.f32.mxu0 0.0
    %834 = vmatmul.mubr.f32.gmra.mxu0 %v760
    %v835 = vpop.f32.mrf.mxu0
    %v836 = vadd.f32 0.0, %v835
    %v837 = vpop.f32.mrf.mxu0
    %838 = vmatprep.mubr.f32.mxu0 0.0
    %839 = vmatmul.mubr.f32.gmra.mxu0 %v762
    %v840 = vpop.f32.mrf.mxu0
    %v841 = vadd.f32 0.0, %v840
    %v842 = vpop.f32.mrf.mxu0
    %843 = vdwg.mxu0
    %v844 = vadd.f32 %v746, %v831
    %v845 = vadd.f32 %v747, %v836
    %v846 = vadd.f32 %v748, %v841
    %v847 = vmul.f32 %v44, %v844
    %v848 = vmul.f32 %v44, %v845
    %v849 = vmul.f32 %v44, %v846
    %v850 = vtanh.pop %v847
    %v851 = vtanh.pop %v848
    %v852 = vtanh.pop %v849
    %v853 = vmul.f32 %v44, %v850
    %v854 = vmul.f32 %v44, %v851
    %v855 = vmul.f32 %v44, %v852
    %v856 = vadd.f32 %v853, %v45
    %v857 = vadd.f32 %v854, %v45
    %v858 = vadd.f32 %v855, %v45
    %v859 = vmul.f32 %v856, %v725
    %v860 = vmul.f32 %v857, %v726
    %v861 = vmul.f32 %v858, %v727
    %865 = vrot.lane.b32.xlu0 %v856, 64
    %v866 = vpop.permute.xlu0 %865
    %867 = vrot.lane.b32.xlu0 %v857, 64
    %v868 = vpop.permute.xlu0 %867
    %869 = vrot.lane.b32.xlu0 %v858, 64
    %v870 = vpop.permute.xlu0 %869
    %v874 = vmul.f32 %v856, %v866
    %v875 = vmul.f32 %v857, %v868
    %v876 = vmul.f32 %v858, %v870
    %880 = vrot.lane.b32.xlu0 %v874, 32
    %v881 = vpop.permute.xlu0 %880
    %882 = vrot.lane.b32.xlu0 %v875, 32
    %v883 = vpop.permute.xlu0 %882
    %884 = vrot.lane.b32.xlu0 %v876, 32
    %v885 = vpop.permute.xlu0 %884
    %v889 = vadd.f32 %v859, %v881
    %v890 = vadd.f32 %v860, %v883
    %v891 = vadd.f32 %v861, %v885
    %v892 = vtanh.pop %v889
    %v893 = vtanh.pop %v890
    %v894 = vtanh.pop %v891
    %898 = vrot.lane.b32.xlu0 %v892, 64
    %v899 = vpop.permute.xlu0 %898
    %900 = vrot.lane.b32.xlu0 %v893, 64
    %v901 = vpop.permute.xlu0 %900
    %902 = vrot.lane.b32.xlu0 %v894, 64
    %v903 = vpop.permute.xlu0 %902
    %v907 = vmul.f32 %v856, %v899
    %v908 = vmul.f32 %v857, %v901
    %v909 = vmul.f32 %v858, %v903
    %v910 = vld [vmem:[%s5 + $0x70] sm:$0xff]
    %v911 = vld [vmem:[%s5 + $0x78] sm:$0xff]
    %v912 = vld [vmem:[%s5 + $0x80] sm:$0xff]
    %v913 = vld [vmem:[%s5 + $0x88] sm:$0xff]
    %v914 = vlaneseq
    %v915 = vshrl.u32 %v914, 7
    %v916 = vsub.s32 2, %v915
    %v917 = vrot.slane %v38, %v916
    %921 = vrot.lane.b32.xlu0 %v907, 32
    %v922 = vpop.permute.xlu0 %921
    %923 = vrot.lane.b32.xlu0 %v908, 32
    %v924 = vpop.permute.xlu0 %923
    %925 = vrot.lane.b32.xlu0 %v909, 32
    %v926 = vpop.permute.xlu0 %925
    %v927 = vsel %vm268, %v922, 0
    %v929 = vsel %vm268, %v924, 0
    %v931 = vsel %vm268, %v926, 0
    %933 = vmatprep.subr.mxu0 0.0
    %934 = vmatpush1.msra.mxu0 0.0
    %935 = vmatprep.subr.mxu0 0.0
    %936 = vmatpush1.msra.mxu0 0.0
    %937 = vmatprep.subr.mxu0 0.0
    %938 = vmatpush1.msra.mxu0 0.0
    %939 = vmatprep.subr.mxu0 0.0
    %940 = vmatpush1.msra.mxu0 0.0
    %941 = vmatprep.subr.mxu0 0.0
    %942 = vmatpush1.msra.mxu0 0.0
    %943 = vmatprep.subr.mxu0 0.0
    %944 = vmatpush1.msra.mxu0 0.0
    %945 = vmatprep.subr.mxu0 0.0
    %946 = vmatpush1.msra.mxu0 0.0
    %947 = vmatprep.subr.mxu0 0.0
    %948 = vmatpush1.msra.mxu0 0.0
    %949 = vmatprep.subr.mxu0 0.0
    %950 = vmatpush1.msra.mxu0 0.0
    %951 = vmatprep.subr.mxu0 0.0
    %952 = vmatpush1.msra.mxu0 0.0
    %953 = vmatprep.subr.mxu0 0.0
    %954 = vmatpush1.msra.mxu0 0.0
    %955 = vmatprep.subr.mxu0 0.0
    %956 = vmatpush1.msra.mxu0 0.0
    %957 = vmatprep.subr.mxu0 0.0
    %958 = vmatpush1.msra.mxu0 %v913
    %959 = vmatprep.subr.mxu0 0.0
    %960 = vmatpush1.msra.mxu0 %v912
    %961 = vmatprep.subr.mxu0 0.0
    %962 = vmatpush1.msra.mxu0 %v911
    %963 = vmatprep.subr.mxu0 0.0
    %964 = vmatpush1.msra.mxu0 %v910
    %965 = vmatprep.subr.mxu0 0.0
    %966 = vmatpush2.msra.mxu0 0.0
    %967 = vmatprep.subr.mxu0 0.0
    %968 = vmatpush2.msra.mxu0 0.0
    %969 = vmatprep.subr.mxu0 0.0
    %970 = vmatpush2.msra.mxu0 0.0
    %971 = vmatprep.subr.mxu0 0.0
    %972 = vmatpush2.msra.mxu0 0.0
    %973 = vmatprep.subr.mxu0 0.0
    %974 = vmatpush2.msra.mxu0 0.0
    %975 = vmatprep.subr.mxu0 0.0
    %976 = vmatpush2.msra.mxu0 0.0
    %977 = vmatprep.subr.mxu0 0.0
    %978 = vmatpush2.msra.mxu0 0.0
    %979 = vmatprep.subr.mxu0 0.0
    %980 = vmatpush2.msra.mxu0 0.0
    %981 = vmatprep.subr.mxu0 0.0
    %982 = vmatpush2.msra.mxu0 0.0
    %983 = vmatprep.subr.mxu0 0.0
    %984 = vmatpush2.msra.mxu0 0.0
    %985 = vmatprep.subr.mxu0 0.0
    %986 = vmatpush2.msra.mxu0 0.0
    %987 = vmatprep.subr.mxu0 0.0
    %988 = vmatpush2.msra.mxu0 0.0
    %989 = vmatprep.subr.mxu0 0.0
    %990 = vmatpush2.msra.mxu0 0.0
    %991 = vmatprep.subr.mxu0 0.0
    %992 = vmatpush2.msra.mxu0 0.0
    %993 = vmatprep.subr.mxu0 0.0
    %994 = vmatpush2.msra.mxu0 0.0
    %995 = vmatprep.subr.mxu0 0.0
    %996 = vmatpush2.msra.mxu0 0.0
    %997 = vmatprep.mubr.f32.mxu0 0.0
    %998 = vmatmul.mubr.f32.gmra.mxu0 %v927
    %v999 = vpop.f32.mrf.mxu0
    %v1000 = vadd.f32 %v917, %v999
    %v1001 = vpop.f32.mrf.mxu0
    %1002 = vmatprep.mubr.f32.mxu0 0.0
    %1003 = vmatmul.mubr.f32.gmra.mxu0 %v929
    %v1004 = vpop.f32.mrf.mxu0
    %v1005 = vadd.f32 %v917, %v1004
    %v1006 = vpop.f32.mrf.mxu0
    %1007 = vmatprep.mubr.f32.mxu0 0.0
    %1008 = vmatmul.mubr.f32.gmra.mxu0 %v931
    %v1009 = vpop.f32.mrf.mxu0
    %v1010 = vadd.f32 %v917, %v1009
    %v1011 = vpop.f32.mrf.mxu0
    %1012 = vdwg.mxu0
    %v1013 = vmax.f32 %v1000, 0.0
    %v1014 = vmax.f32 %v1005, 0.0
    %v1015 = vmax.f32 %v1010, 0.0
    %v1016 = vsel %vm268, %v1013, 0.0
    %v1017 = vsel %vm268, %v1014, 0.0
    %v1018 = vadd.f32 %v1016, %v1017
    %v1019 = vsel %vm268, %v1015, 0.0
    %v1020 = vadd.f32 %v1018, %v1019
    %v1021 = vrot.slane %v1020, 4
    %v1022 = vadd.f32 %v1020, %v1021
    %v1023 = vrot.slane %v1022, 2
    %v1024 = vadd.f32 %v1022, %v1023
    %v1025 = vrot.slane %v1024, 1
    %v1026 = vadd.f32 %v1024, %v1025
    %v1027 = vrcp.pop 24.0
    %v1028 = vmul.f32 %v1026, %v1027
    %v1029 = vsub.f32 %v1013, %v1028
    %v1030 = vsub.f32 %v1014, %v1028
    %v1031 = vsub.f32 %v1015, %v1028
    %v1032 = vmul.f32 %v1029, %v1029
    %v1033 = vmul.f32 %v1030, %v1030
    %v1034 = vmul.f32 %v1031, %v1031
    %v1035 = vsel %vm268, %v1032, 0.0
    %v1036 = vsel %vm268, %v1033, 0.0
    %v1037 = vadd.f32 %v1035, %v1036
    %v1038 = vsel %vm268, %v1034, 0.0
    %v1039 = vadd.f32 %v1037, %v1038
    %v1040 = vrot.slane %v1039, 4
    %v1041 = vadd.f32 %v1039, %v1040
    %v1042 = vrot.slane %v1041, 2
    %v1043 = vadd.f32 %v1041, %v1042
    %v1044 = vrot.slane %v1043, 1
    %v1045 = vadd.f32 %v1043, %v1044
    %v1046 = vmul.f32 %v1045, %v1027
    %v1047 = vadd.f32 %v1046, 1e-05
    %v1048 = vrsqrt.pop %v1047
    %v1049 = vmul.f32 %v1029, %v1048
    %v1050 = vmul.f32 %v1030, %v1048
    %v1051 = vmul.f32 %v1031, %v1048
    %v1052 = vlaneseq
    %v1053 = vshrl.u32 %v1052, 7
    %v1054 = vsub.s32 3, %v1053
    %v1055 = vrot.slane %v38, %v1054
    %v1056 = vmul.f32 %v1049, %v1055
    %v1057 = vmul.f32 %v1050, %v1055
    %v1058 = vmul.f32 %v1051, %v1055
    %v1059 = vlaneseq
    %v1060 = vshrl.u32 %v1059, 7
    %v1061 = vsub.s32 4, %v1060
    %v1062 = vrot.slane %v38, %v1061
    %v1063 = vadd.f32 %v1056, %v1062
    %v1064 = vadd.f32 %v1057, %v1062
    %v1065 = vadd.f32 %v1058, %v1062
    %v1066 = vld [vmem:[%s5 + $0x60] sm:$0xff]
    %v1067 = vld [vmem:[%s5 + $0x68] sm:$0xf]
    %v1068 = vld [vmem:[%s5 + $0x40] sm:$0xff]
    %v1069 = vld [vmem:[%s5 + $0x48] sm:$0xff]
    %v1070 = vld [vmem:[%s5 + $0x50] sm:$0xff]
    %v1071 = vld [vmem:[%s5 + $0x58] sm:$0xff]
    %v1072 = vld [vmem:[%s1] sm:$0xff]
    %v1073 = vld [vmem:[%s1 + $0x8] sm:$0xff]
    %v1074 = vld [vmem:[%s1 + $0x10] sm:$0xff]
    %v1075 = vld [vmem:[%s2] sm:$0xff]
    %v1076 = vld [vmem:[%s2 + $0x8] sm:$0xff]
    %v1077 = vld [vmem:[%s2 + $0x10] sm:$0xff]
    %vm1078 = vcmask 31744
    %v1080 = vsel %vm1078, %v1075, 0
    %v1083 = vsel %vm1078, %v1076, 0
    %v1086 = vsel %vm1078, %v1077, 0
    %vm1088 = vcmask 1043456
    %v1090 = vsel %vm1088, %v1067, 0
    %1092 = vmatprep.subr.mxu0 0.0
    %1093 = vmatpush1.msra.mxu0 0.0
    %1094 = vmatprep.subr.mxu0 0.0
    %1095 = vmatpush1.msra.mxu0 0.0
    %1096 = vmatprep.subr.mxu0 0.0
    %1097 = vmatpush1.msra.mxu0 0.0
    %1098 = vmatprep.subr.mxu0 0.0
    %1099 = vmatpush1.msra.mxu0 0.0
    %1100 = vmatprep.subr.mxu0 0.0
    %1101 = vmatpush1.msra.mxu0 0.0
    %1102 = vmatprep.subr.mxu0 0.0
    %1103 = vmatpush1.msra.mxu0 0.0
    %1104 = vmatprep.subr.mxu0 0.0
    %1105 = vmatpush1.msra.mxu0 0.0
    %1106 = vmatprep.subr.mxu0 0.0
    %1107 = vmatpush1.msra.mxu0 0.0
    %1108 = vmatprep.subr.mxu0 0.0
    %1109 = vmatpush1.msra.mxu0 0.0
    %1110 = vmatprep.subr.mxu0 0.0
    %1111 = vmatpush1.msra.mxu0 0.0
    %1112 = vmatprep.subr.mxu0 0.0
    %1113 = vmatpush1.msra.mxu0 0.0
    %1114 = vmatprep.subr.mxu0 0.0
    %1115 = vmatpush1.msra.mxu0 0.0
    %1116 = vmatprep.subr.mxu0 0.0
    %1117 = vmatpush1.msra.mxu0 0.0
    %1118 = vmatprep.subr.mxu0 0.0
    %1119 = vmatpush1.msra.mxu0 0.0
    %1120 = vmatprep.subr.mxu0 0.0
    %1121 = vmatpush1.msra.mxu0 0.0
    %1122 = vmatprep.subr.mxu0 0.0
    %1123 = vmatpush1.msra.mxu0 %v1090
    %1124 = vmatprep.subr.mxu0 0.0
    %1125 = vmatpush2.msra.mxu0 0.0
    %1126 = vmatprep.subr.mxu0 0.0
    %1127 = vmatpush2.msra.mxu0 0.0
    %1128 = vmatprep.subr.mxu0 0.0
    %1129 = vmatpush2.msra.mxu0 0.0
    %1130 = vmatprep.subr.mxu0 0.0
    %1131 = vmatpush2.msra.mxu0 0.0
    %1132 = vmatprep.subr.mxu0 0.0
    %1133 = vmatpush2.msra.mxu0 0.0
    %1134 = vmatprep.subr.mxu0 0.0
    %1135 = vmatpush2.msra.mxu0 0.0
    %1136 = vmatprep.subr.mxu0 0.0
    %1137 = vmatpush2.msra.mxu0 0.0
    %1138 = vmatprep.subr.mxu0 0.0
    %1139 = vmatpush2.msra.mxu0 0.0
    %1140 = vmatprep.subr.mxu0 0.0
    %1141 = vmatpush2.msra.mxu0 0.0
    %1142 = vmatprep.subr.mxu0 0.0
    %1143 = vmatpush2.msra.mxu0 0.0
    %1144 = vmatprep.subr.mxu0 0.0
    %1145 = vmatpush2.msra.mxu0 0.0
    %1146 = vmatprep.subr.mxu0 0.0
    %1147 = vmatpush2.msra.mxu0 0.0
    %1148 = vmatprep.subr.mxu0 0.0
    %1149 = vmatpush2.msra.mxu0 0.0
    %1150 = vmatprep.subr.mxu0 0.0
    %1151 = vmatpush2.msra.mxu0 0.0
    %1152 = vmatprep.subr.mxu0 0.0
    %1153 = vmatpush2.msra.mxu0 0.0
    %1154 = vmatprep.subr.mxu0 0.0
    %1155 = vmatpush2.msra.mxu0 0.0
    %1156 = vmatprep.mubr.f32.mxu0 0.0
    %1157 = vmatmul.mubr.f32.gmra.mxu0 %v1080
    %v1158 = vpop.f32.mrf.mxu0
    %v1159 = vadd.f32 0.0, %v1158
    %v1160 = vpop.f32.mrf.mxu0
    %1161 = vmatprep.mubr.f32.mxu0 0.0
    %1162 = vmatmul.mubr.f32.gmra.mxu0 %v1083
    %v1163 = vpop.f32.mrf.mxu0
    %v1164 = vadd.f32 0.0, %v1163
    %v1165 = vpop.f32.mrf.mxu0
    %1166 = vmatprep.mubr.f32.mxu0 0.0
    %1167 = vmatmul.mubr.f32.gmra.mxu0 %v1086
    %v1168 = vpop.f32.mrf.mxu0
    %v1169 = vadd.f32 0.0, %v1168
    %v1170 = vpop.f32.mrf.mxu0
    %1171 = vdwg.mxu0
    %vm1172 = vcmask 64512
    %v1174 = vsel %vm1172, %v1072, 0
    %v1177 = vsel %vm1172, %v1073, 0
    %v1180 = vsel %vm1172, %v1074, 0
    %1182 = vmatprep.subr.mxu0 0.0
    %1183 = vmatpush1.msra.mxu0 0.0
    %1184 = vmatprep.subr.mxu0 0.0
    %1185 = vmatpush1.msra.mxu0 0.0
    %1186 = vmatprep.subr.mxu0 0.0
    %1187 = vmatpush1.msra.mxu0 0.0
    %1188 = vmatprep.subr.mxu0 0.0
    %1189 = vmatpush1.msra.mxu0 0.0
    %1190 = vmatprep.subr.mxu0 0.0
    %1191 = vmatpush1.msra.mxu0 0.0
    %1192 = vmatprep.subr.mxu0 0.0
    %1193 = vmatpush1.msra.mxu0 0.0
    %1194 = vmatprep.subr.mxu0 0.0
    %1195 = vmatpush1.msra.mxu0 0.0
    %1196 = vmatprep.subr.mxu0 0.0
    %1197 = vmatpush1.msra.mxu0 0.0
    %1198 = vmatprep.subr.mxu0 0.0
    %1199 = vmatpush1.msra.mxu0 0.0
    %1200 = vmatprep.subr.mxu0 0.0
    %1201 = vmatpush1.msra.mxu0 0.0
    %1202 = vmatprep.subr.mxu0 0.0
    %1203 = vmatpush1.msra.mxu0 0.0
    %1204 = vmatprep.subr.mxu0 0.0
    %1205 = vmatpush1.msra.mxu0 0.0
    %1206 = vmatprep.subr.mxu0 0.0
    %1207 = vmatpush1.msra.mxu0 0.0
    %1208 = vmatprep.subr.mxu0 0.0
    %1209 = vmatpush1.msra.mxu0 0.0
    %1210 = vmatprep.subr.mxu0 0.0
    %1211 = vmatpush1.msra.mxu0 0.0
    %1212 = vmatprep.subr.mxu0 0.0
    %1213 = vmatpush1.msra.mxu0 %v1066
    %1214 = vmatprep.subr.mxu0 0.0
    %1215 = vmatpush2.msra.mxu0 0.0
    %1216 = vmatprep.subr.mxu0 0.0
    %1217 = vmatpush2.msra.mxu0 0.0
    %1218 = vmatprep.subr.mxu0 0.0
    %1219 = vmatpush2.msra.mxu0 0.0
    %1220 = vmatprep.subr.mxu0 0.0
    %1221 = vmatpush2.msra.mxu0 0.0
    %1222 = vmatprep.subr.mxu0 0.0
    %1223 = vmatpush2.msra.mxu0 0.0
    %1224 = vmatprep.subr.mxu0 0.0
    %1225 = vmatpush2.msra.mxu0 0.0
    %1226 = vmatprep.subr.mxu0 0.0
    %1227 = vmatpush2.msra.mxu0 0.0
    %1228 = vmatprep.subr.mxu0 0.0
    %1229 = vmatpush2.msra.mxu0 0.0
    %1230 = vmatprep.subr.mxu0 0.0
    %1231 = vmatpush2.msra.mxu0 0.0
    %1232 = vmatprep.subr.mxu0 0.0
    %1233 = vmatpush2.msra.mxu0 0.0
    %1234 = vmatprep.subr.mxu0 0.0
    %1235 = vmatpush2.msra.mxu0 0.0
    %1236 = vmatprep.subr.mxu0 0.0
    %1237 = vmatpush2.msra.mxu0 0.0
    %1238 = vmatprep.subr.mxu0 0.0
    %1239 = vmatpush2.msra.mxu0 0.0
    %1240 = vmatprep.subr.mxu0 0.0
    %1241 = vmatpush2.msra.mxu0 0.0
    %1242 = vmatprep.subr.mxu0 0.0
    %1243 = vmatpush2.msra.mxu0 0.0
    %1244 = vmatprep.subr.mxu0 0.0
    %1245 = vmatpush2.msra.mxu0 0.0
    %1246 = vmatprep.mubr.f32.mxu0 0.0
    %1247 = vmatmul.mubr.f32.gmra.mxu0 %v1174
    %v1248 = vpop.f32.mrf.mxu0
    %v1249 = vadd.f32 %v1159, %v1248
    %v1250 = vpop.f32.mrf.mxu0
    %1251 = vmatprep.mubr.f32.mxu0 0.0
    %1252 = vmatmul.mubr.f32.gmra.mxu0 %v1177
    %v1253 = vpop.f32.mrf.mxu0
    %v1254 = vadd.f32 %v1164, %v1253
    %v1255 = vpop.f32.mrf.mxu0
    %1256 = vmatprep.mubr.f32.mxu0 0.0
    %1257 = vmatmul.mubr.f32.gmra.mxu0 %v1180
    %v1258 = vpop.f32.mrf.mxu0
    %v1259 = vadd.f32 %v1169, %v1258
    %v1260 = vpop.f32.mrf.mxu0
    %1261 = vdwg.mxu0
    %v1263 = vsel %vm268, %v1063, 0
    %v1266 = vsel %vm268, %v1064, 0
    %v1269 = vsel %vm268, %v1065, 0
    %1271 = vmatprep.subr.mxu0 0.0
    %1272 = vmatpush1.msra.mxu0 0.0
    %1273 = vmatprep.subr.mxu0 0.0
    %1274 = vmatpush1.msra.mxu0 0.0
    %1275 = vmatprep.subr.mxu0 0.0
    %1276 = vmatpush1.msra.mxu0 0.0
    %1277 = vmatprep.subr.mxu0 0.0
    %1278 = vmatpush1.msra.mxu0 0.0
    %1279 = vmatprep.subr.mxu0 0.0
    %1280 = vmatpush1.msra.mxu0 0.0
    %1281 = vmatprep.subr.mxu0 0.0
    %1282 = vmatpush1.msra.mxu0 0.0
    %1283 = vmatprep.subr.mxu0 0.0
    %1284 = vmatpush1.msra.mxu0 0.0
    %1285 = vmatprep.subr.mxu0 0.0
    %1286 = vmatpush1.msra.mxu0 0.0
    %1287 = vmatprep.subr.mxu0 0.0
    %1288 = vmatpush1.msra.mxu0 0.0
    %1289 = vmatprep.subr.mxu0 0.0
    %1290 = vmatpush1.msra.mxu0 0.0
    %1291 = vmatprep.subr.mxu0 0.0
    %1292 = vmatpush1.msra.mxu0 0.0
    %1293 = vmatprep.subr.mxu0 0.0
    %1294 = vmatpush1.msra.mxu0 0.0
    %1295 = vmatprep.subr.mxu0 0.0
    %1296 = vmatpush1.msra.mxu0 %v1071
    %1297 = vmatprep.subr.mxu0 0.0
    %1298 = vmatpush1.msra.mxu0 %v1070
    %1299 = vmatprep.subr.mxu0 0.0
    %1300 = vmatpush1.msra.mxu0 %v1069
    %1301 = vmatprep.subr.mxu0 0.0
    %1302 = vmatpush1.msra.mxu0 %v1068
    %1303 = vmatprep.subr.mxu0 0.0
    %1304 = vmatpush2.msra.mxu0 0.0
    %1305 = vmatprep.subr.mxu0 0.0
    %1306 = vmatpush2.msra.mxu0 0.0
    %1307 = vmatprep.subr.mxu0 0.0
    %1308 = vmatpush2.msra.mxu0 0.0
    %1309 = vmatprep.subr.mxu0 0.0
    %1310 = vmatpush2.msra.mxu0 0.0
    %1311 = vmatprep.subr.mxu0 0.0
    %1312 = vmatpush2.msra.mxu0 0.0
    %1313 = vmatprep.subr.mxu0 0.0
    %1314 = vmatpush2.msra.mxu0 0.0
    %1315 = vmatprep.subr.mxu0 0.0
    %1316 = vmatpush2.msra.mxu0 0.0
    %1317 = vmatprep.subr.mxu0 0.0
    %1318 = vmatpush2.msra.mxu0 0.0
    %1319 = vmatprep.subr.mxu0 0.0
    %1320 = vmatpush2.msra.mxu0 0.0
    %1321 = vmatprep.subr.mxu0 0.0
    %1322 = vmatpush2.msra.mxu0 0.0
    %1323 = vmatprep.subr.mxu0 0.0
    %1324 = vmatpush2.msra.mxu0 0.0
    %1325 = vmatprep.subr.mxu0 0.0
    %1326 = vmatpush2.msra.mxu0 0.0
    %1327 = vmatprep.subr.mxu0 0.0
    %1328 = vmatpush2.msra.mxu0 0.0
    %1329 = vmatprep.subr.mxu0 0.0
    %1330 = vmatpush2.msra.mxu0 0.0
    %1331 = vmatprep.subr.mxu0 0.0
    %1332 = vmatpush2.msra.mxu0 0.0
    %1333 = vmatprep.subr.mxu0 0.0
    %1334 = vmatpush2.msra.mxu0 0.0
    %1335 = vmatprep.mubr.f32.mxu0 0.0
    %1336 = vmatmul.mubr.f32.gmra.mxu0 %v1263
    %v1337 = vpop.f32.mrf.mxu0
    %v1338 = vadd.f32 0.0, %v1337
    %v1339 = vpop.f32.mrf.mxu0
    %1340 = vmatprep.mubr.f32.mxu0 0.0
    %1341 = vmatmul.mubr.f32.gmra.mxu0 %v1266
    %v1342 = vpop.f32.mrf.mxu0
    %v1343 = vadd.f32 0.0, %v1342
    %v1344 = vpop.f32.mrf.mxu0
    %1345 = vmatprep.mubr.f32.mxu0 0.0
    %1346 = vmatmul.mubr.f32.gmra.mxu0 %v1269
    %v1347 = vpop.f32.mrf.mxu0
    %v1348 = vadd.f32 0.0, %v1347
    %v1349 = vpop.f32.mrf.mxu0
    %1350 = vdwg.mxu0
    %v1351 = vadd.f32 %v1249, %v1338
    %v1352 = vadd.f32 %v1254, %v1343
    %v1353 = vadd.f32 %v1259, %v1348
    %v1354 = vlaneseq
    %v1355 = vshrl.u32 %v1354, 7
    %v1356 = vsub.s32 1, %v1355
    %v1357 = vrot.slane %v38, %v1356
    %v1358 = vadd.f32 %v1351, %v1357
    %v1359 = vadd.f32 %v1352, %v1357
    %v1360 = vadd.f32 %v1353, %v1357
    %v1361 = vld [vmem:[%s5 + $0x20] sm:$0xff]
    %v1362 = vld [vmem:[%s5 + $0x28] sm:$0xff]
    %v1363 = vld [vmem:[%s5 + $0x30] sm:$0xff]
    %v1364 = vld [vmem:[%s5 + $0x38] sm:$0xff]
    %1365 = vmatprep.subr.mxu0 0.0
    %1366 = vmatpush1.msra.mxu0 0.0
    %1367 = vmatprep.subr.mxu0 0.0
    %1368 = vmatpush1.msra.mxu0 0.0
    %1369 = vmatprep.subr.mxu0 0.0
    %1370 = vmatpush1.msra.mxu0 0.0
    %1371 = vmatprep.subr.mxu0 0.0
    %1372 = vmatpush1.msra.mxu0 0.0
    %1373 = vmatprep.subr.mxu0 0.0
    %1374 = vmatpush1.msra.mxu0 0.0
    %1375 = vmatprep.subr.mxu0 0.0
    %1376 = vmatpush1.msra.mxu0 0.0
    %1377 = vmatprep.subr.mxu0 0.0
    %1378 = vmatpush1.msra.mxu0 0.0
    %1379 = vmatprep.subr.mxu0 0.0
    %1380 = vmatpush1.msra.mxu0 0.0
    %1381 = vmatprep.subr.mxu0 0.0
    %1382 = vmatpush1.msra.mxu0 0.0
    %1383 = vmatprep.subr.mxu0 0.0
    %1384 = vmatpush1.msra.mxu0 0.0
    %1385 = vmatprep.subr.mxu0 0.0
    %1386 = vmatpush1.msra.mxu0 0.0
    %1387 = vmatprep.subr.mxu0 0.0
    %1388 = vmatpush1.msra.mxu0 0.0
    %1389 = vmatprep.subr.mxu0 0.0
    %1390 = vmatpush1.msra.mxu0 %v1364
    %1391 = vmatprep.subr.mxu0 0.0
    %1392 = vmatpush1.msra.mxu0 %v1363
    %1393 = vmatprep.subr.mxu0 0.0
    %1394 = vmatpush1.msra.mxu0 %v1362
    %1395 = vmatprep.subr.mxu0 0.0
    %1396 = vmatpush1.msra.mxu0 %v1361
    %1397 = vmatprep.subr.mxu0 0.0
    %1398 = vmatpush2.msra.mxu0 0.0
    %1399 = vmatprep.subr.mxu0 0.0
    %1400 = vmatpush2.msra.mxu0 0.0
    %1401 = vmatprep.subr.mxu0 0.0
    %1402 = vmatpush2.msra.mxu0 0.0
    %1403 = vmatprep.subr.mxu0 0.0
    %1404 = vmatpush2.msra.mxu0 0.0
    %1405 = vmatprep.subr.mxu0 0.0
    %1406 = vmatpush2.msra.mxu0 0.0
    %1407 = vmatprep.subr.mxu0 0.0
    %1408 = vmatpush2.msra.mxu0 0.0
    %1409 = vmatprep.subr.mxu0 0.0
    %1410 = vmatpush2.msra.mxu0 0.0
    %1411 = vmatprep.subr.mxu0 0.0
    %1412 = vmatpush2.msra.mxu0 0.0
    %1413 = vmatprep.subr.mxu0 0.0
    %1414 = vmatpush2.msra.mxu0 0.0
    %1415 = vmatprep.subr.mxu0 0.0
    %1416 = vmatpush2.msra.mxu0 0.0
    %1417 = vmatprep.subr.mxu0 0.0
    %1418 = vmatpush2.msra.mxu0 0.0
    %1419 = vmatprep.subr.mxu0 0.0
    %1420 = vmatpush2.msra.mxu0 0.0
    %1421 = vmatprep.subr.mxu0 0.0
    %1422 = vmatpush2.msra.mxu0 0.0
    %1423 = vmatprep.subr.mxu0 0.0
    %1424 = vmatpush2.msra.mxu0 0.0
    %1425 = vmatprep.subr.mxu0 0.0
    %1426 = vmatpush2.msra.mxu0 0.0
    %1427 = vmatprep.subr.mxu0 0.0
    %1428 = vmatpush2.msra.mxu0 0.0
    %1429 = vmatprep.mubr.f32.mxu0 0.0
    %1430 = vmatmul.mubr.f32.gmra.mxu0 %v270
    %v1431 = vpop.f32.mrf.mxu0
    %v1432 = vadd.f32 0.0, %v1431
    %v1433 = vpop.f32.mrf.mxu0
    %1434 = vdwg.mxu0
    %v1435 = vadd.f32 %v1360, %v1432
    %v1436 = vmul.f32 %v44, %v1435
    %v1437 = vtanh.pop %v1436
    %v1438 = vmul.f32 %v44, %v1437
    %v1439 = vadd.f32 %v1438, %v45
    %v1440 = vmul.f32 %v1439, 0.0
    %1442 = vrot.lane.b32.xlu0 %v1439, 64
    %v1443 = vpop.permute.xlu0 %1442
    %v1445 = vmul.f32 %v1439, %v1443
    %1447 = vrot.lane.b32.xlu0 %v1445, 32
    %v1448 = vpop.permute.xlu0 %1447
    %v1450 = vadd.f32 %v1440, %v1448
    %v1451 = vtanh.pop %v1450
    %1453 = vrot.lane.b32.xlu0 %v1451, 64
    %v1454 = vpop.permute.xlu0 %1453
    %v1456 = vmul.f32 %v1439, %v1454
    %v1457 = vld [vmem:[%s3] sm:$0xff]
    %v1458 = vld [vmem:[%s3 + $0x8] sm:$0xff]
    %v1459 = vadd.s32 %v40, 1
    %1460 = vset.pattern.permute.xlu0 0
    %1461 = vperm.xlu0 %1460, %v1458
    %v1462 = vpop.permute.xlu0 %1461
    %vm1463 = vcmp.eq.s32.totalorder %v1459, %v1462
    %v1464 = vsel %vm1463, 0.5, 0.0
    %1465 = vset.pattern.permute.xlu0 1
    %1466 = vperm.xlu0 %1465, %v1458
    %v1467 = vpop.permute.xlu0 %1466
    %vm1468 = vcmp.eq.s32.totalorder %v1459, %v1467
    %v1469 = vsel %vm1468, 0.5, 0.0
    %v1470 = vadd.f32 %v1464, %v1469
    %1472 = vrot.lane.b32.xlu0 %v1456, 32
    %v1473 = vpop.permute.xlu0 %1472
    %v1475 = vsel %vm268, %v1473, %v1450
    %v1477 = vsel %vm1172, %v1470, 0
    %1479 = vmatprep.subr.mxu0 0.0
    %1480 = vmatpush1.msra.mxu0 0.0
    %1481 = vmatprep.subr.mxu0 0.0
    %1482 = vmatpush1.msra.mxu0 0.0
    %1483 = vmatprep.subr.mxu0 0.0
    %1484 = vmatpush1.msra.mxu0 0.0
    %1485 = vmatprep.subr.mxu0 0.0
    %1486 = vmatpush1.msra.mxu0 0.0
    %1487 = vmatprep.subr.mxu0 0.0
    %1488 = vmatpush1.msra.mxu0 0.0
    %1489 = vmatprep.subr.mxu0 0.0
    %1490 = vmatpush1.msra.mxu0 0.0
    %1491 = vmatprep.subr.mxu0 0.0
    %1492 = vmatpush1.msra.mxu0 0.0
    %1493 = vmatprep.subr.mxu0 0.0
    %1494 = vmatpush1.msra.mxu0 0.0
    %1495 = vmatprep.subr.mxu0 0.0
    %1496 = vmatpush1.msra.mxu0 0.0
    %1497 = vmatprep.subr.mxu0 0.0
    %1498 = vmatpush1.msra.mxu0 0.0
    %1499 = vmatprep.subr.mxu0 0.0
    %1500 = vmatpush1.msra.mxu0 0.0
    %1501 = vmatprep.subr.mxu0 0.0
    %1502 = vmatpush1.msra.mxu0 0.0
    %1503 = vmatprep.subr.mxu0 0.0
    %1504 = vmatpush1.msra.mxu0 0.0
    %1505 = vmatprep.subr.mxu0 0.0
    %1506 = vmatpush1.msra.mxu0 0.0
    %1507 = vmatprep.subr.mxu0 0.0
    %1508 = vmatpush1.msra.mxu0 0.0
    %1509 = vmatprep.subr.mxu0 0.0
    %1510 = vmatpush1.msra.mxu0 %v1475
    %1511 = vmatprep.subr.mxu0 0.0
    %1512 = vmatpush2.msra.mxu0 0.0
    %1513 = vmatprep.subr.mxu0 0.0
    %1514 = vmatpush2.msra.mxu0 0.0
    %1515 = vmatprep.subr.mxu0 0.0
    %1516 = vmatpush2.msra.mxu0 0.0
    %1517 = vmatprep.subr.mxu0 0.0
    %1518 = vmatpush2.msra.mxu0 0.0
    %1519 = vmatprep.subr.mxu0 0.0
    %1520 = vmatpush2.msra.mxu0 0.0
    %1521 = vmatprep.subr.mxu0 0.0
    %1522 = vmatpush2.msra.mxu0 0.0
    %1523 = vmatprep.subr.mxu0 0.0
    %1524 = vmatpush2.msra.mxu0 0.0
    %1525 = vmatprep.subr.mxu0 0.0
    %1526 = vmatpush2.msra.mxu0 0.0
    %1527 = vmatprep.subr.mxu0 0.0
    %1528 = vmatpush2.msra.mxu0 0.0
    %1529 = vmatprep.subr.mxu0 0.0
    %1530 = vmatpush2.msra.mxu0 0.0
    %1531 = vmatprep.subr.mxu0 0.0
    %1532 = vmatpush2.msra.mxu0 0.0
    %1533 = vmatprep.subr.mxu0 0.0
    %1534 = vmatpush2.msra.mxu0 0.0
    %1535 = vmatprep.subr.mxu0 0.0
    %1536 = vmatpush2.msra.mxu0 0.0
    %1537 = vmatprep.subr.mxu0 0.0
    %1538 = vmatpush2.msra.mxu0 0.0
    %1539 = vmatprep.subr.mxu0 0.0
    %1540 = vmatpush2.msra.mxu0 0.0
    %1541 = vmatprep.subr.mxu0 0.0
    %1542 = vmatpush2.msra.mxu0 0.0
    %1543 = vmatprep.mubr.f32.mxu0 0.0
    %1544 = vmatmul.mubr.f32.gmra.mxu0 %v1477
    %v1545 = vpop.f32.mrf.mxu0
    %v1546 = vadd.f32 0.0, %v1545
    %v1547 = vpop.f32.mrf.mxu0
    %1548 = vdwg.mxu0
    %v1550 = vsel %vm268, %v1546, 0
    %1552 = vmatprep.subr.mxu0 0.0
    %1553 = vmatpush1.msra.mxu0 0.0
    %1554 = vmatprep.subr.mxu0 0.0
    %1555 = vmatpush1.msra.mxu0 0.0
    %1556 = vmatprep.subr.mxu0 0.0
    %1557 = vmatpush1.msra.mxu0 0.0
    %1558 = vmatprep.subr.mxu0 0.0
    %1559 = vmatpush1.msra.mxu0 0.0
    %1560 = vmatprep.subr.mxu0 0.0
    %1561 = vmatpush1.msra.mxu0 0.0
    %1562 = vmatprep.subr.mxu0 0.0
    %1563 = vmatpush1.msra.mxu0 0.0
    %1564 = vmatprep.subr.mxu0 0.0
    %1565 = vmatpush1.msra.mxu0 0.0
    %1566 = vmatprep.subr.mxu0 0.0
    %1567 = vmatpush1.msra.mxu0 0.0
    %1568 = vmatprep.subr.mxu0 0.0
    %1569 = vmatpush1.msra.mxu0 0.0
    %1570 = vmatprep.subr.mxu0 0.0
    %1571 = vmatpush1.msra.mxu0 0.0
    %1572 = vmatprep.subr.mxu0 0.0
    %1573 = vmatpush1.msra.mxu0 0.0
    %1574 = vmatprep.subr.mxu0 0.0
    %1575 = vmatpush1.msra.mxu0 0.0
    %1576 = vmatprep.subr.mxu0 0.0
    %1577 = vmatpush1.msra.mxu0 %v1364
    %1578 = vmatprep.subr.mxu0 0.0
    %1579 = vmatpush1.msra.mxu0 %v1363
    %1580 = vmatprep.subr.mxu0 0.0
    %1581 = vmatpush1.msra.mxu0 %v1362
    %1582 = vmatprep.subr.mxu0 0.0
    %1583 = vmatpush1.msra.mxu0 %v1361
    %1584 = vmatprep.subr.mxu0 0.0
    %1585 = vmatpush2.msra.mxu0 0.0
    %1586 = vmatprep.subr.mxu0 0.0
    %1587 = vmatpush2.msra.mxu0 0.0
    %1588 = vmatprep.subr.mxu0 0.0
    %1589 = vmatpush2.msra.mxu0 0.0
    %1590 = vmatprep.subr.mxu0 0.0
    %1591 = vmatpush2.msra.mxu0 0.0
    %1592 = vmatprep.subr.mxu0 0.0
    %1593 = vmatpush2.msra.mxu0 0.0
    %1594 = vmatprep.subr.mxu0 0.0
    %1595 = vmatpush2.msra.mxu0 0.0
    %1596 = vmatprep.subr.mxu0 0.0
    %1597 = vmatpush2.msra.mxu0 0.0
    %1598 = vmatprep.subr.mxu0 0.0
    %1599 = vmatpush2.msra.mxu0 0.0
    %1600 = vmatprep.subr.mxu0 0.0
    %1601 = vmatpush2.msra.mxu0 0.0
    %1602 = vmatprep.subr.mxu0 0.0
    %1603 = vmatpush2.msra.mxu0 0.0
    %1604 = vmatprep.subr.mxu0 0.0
    %1605 = vmatpush2.msra.mxu0 0.0
    %1606 = vmatprep.subr.mxu0 0.0
    %1607 = vmatpush2.msra.mxu0 0.0
    %1608 = vmatprep.subr.mxu0 0.0
    %1609 = vmatpush2.msra.mxu0 0.0
    %1610 = vmatprep.subr.mxu0 0.0
    %1611 = vmatpush2.msra.mxu0 0.0
    %1612 = vmatprep.subr.mxu0 0.0
    %1613 = vmatpush2.msra.mxu0 0.0
    %1614 = vmatprep.subr.mxu0 0.0
    %1615 = vmatpush2.msra.mxu0 0.0
    %1616 = vmatprep.mubr.f32.mxu0 0.0
    %1617 = vmatmul.mubr.f32.gmra.mxu0 %v1550
    %v1618 = vpop.f32.mrf.mxu0
    %v1619 = vadd.f32 0.0, %v1618
    %v1620 = vpop.f32.mrf.mxu0
    %1621 = vdwg.mxu0
    %v1622 = vadd.f32 %v1359, %v1619
    %v1623 = vmul.f32 %v44, %v1622
    %v1624 = vtanh.pop %v1623
    %v1625 = vmul.f32 %v44, %v1624
    %v1626 = vadd.f32 %v1625, %v45
    %v1627 = vmul.f32 %v1626, %v1546
    %1629 = vrot.lane.b32.xlu0 %v1626, 64
    %v1630 = vpop.permute.xlu0 %1629
    %v1632 = vmul.f32 %v1626, %v1630
    %1634 = vrot.lane.b32.xlu0 %v1632, 32
    %v1635 = vpop.permute.xlu0 %1634
    %v1637 = vadd.f32 %v1627, %v1635
    %v1638 = vtanh.pop %v1637
    %1640 = vrot.lane.b32.xlu0 %v1638, 64
    %v1641 = vpop.permute.xlu0 %1640
    %v1643 = vmul.f32 %v1626, %v1641
    %1644 = vset.pattern.permute.xlu0 0
    %1645 = vperm.xlu0 %1644, %v1457
    %v1646 = vpop.permute.xlu0 %1645
    %vm1647 = vcmp.eq.s32.totalorder %v1459, %v1646
    %v1648 = vsel %vm1647, 0.5, 0.0
    %1649 = vset.pattern.permute.xlu0 1
    %1650 = vperm.xlu0 %1649, %v1457
    %v1651 = vpop.permute.xlu0 %1650
    %vm1652 = vcmp.eq.s32.totalorder %v1459, %v1651
    %v1653 = vsel %vm1652, 0.5, 0.0
    %v1654 = vadd.f32 %v1648, %v1653
    %1656 = vrot.lane.b32.xlu0 %v1643, 32
    %v1657 = vpop.permute.xlu0 %1656
    %v1659 = vsel %vm268, %v1657, %v1637
    %v1661 = vsel %vm1172, %v1654, 0
    %1663 = vmatprep.subr.mxu0 0.0
    %1664 = vmatpush1.msra.mxu0 0.0
    %1665 = vmatprep.subr.mxu0 0.0
    %1666 = vmatpush1.msra.mxu0 0.0
    %1667 = vmatprep.subr.mxu0 0.0
    %1668 = vmatpush1.msra.mxu0 0.0
    %1669 = vmatprep.subr.mxu0 0.0
    %1670 = vmatpush1.msra.mxu0 0.0
    %1671 = vmatprep.subr.mxu0 0.0
    %1672 = vmatpush1.msra.mxu0 0.0
    %1673 = vmatprep.subr.mxu0 0.0
    %1674 = vmatpush1.msra.mxu0 0.0
    %1675 = vmatprep.subr.mxu0 0.0
    %1676 = vmatpush1.msra.mxu0 0.0
    %1677 = vmatprep.subr.mxu0 0.0
    %1678 = vmatpush1.msra.mxu0 0.0
    %1679 = vmatprep.subr.mxu0 0.0
    %1680 = vmatpush1.msra.mxu0 0.0
    %1681 = vmatprep.subr.mxu0 0.0
    %1682 = vmatpush1.msra.mxu0 0.0
    %1683 = vmatprep.subr.mxu0 0.0
    %1684 = vmatpush1.msra.mxu0 0.0
    %1685 = vmatprep.subr.mxu0 0.0
    %1686 = vmatpush1.msra.mxu0 0.0
    %1687 = vmatprep.subr.mxu0 0.0
    %1688 = vmatpush1.msra.mxu0 0.0
    %1689 = vmatprep.subr.mxu0 0.0
    %1690 = vmatpush1.msra.mxu0 0.0
    %1691 = vmatprep.subr.mxu0 0.0
    %1692 = vmatpush1.msra.mxu0 0.0
    %1693 = vmatprep.subr.mxu0 0.0
    %1694 = vmatpush1.msra.mxu0 %v1659
    %1695 = vmatprep.subr.mxu0 0.0
    %1696 = vmatpush2.msra.mxu0 0.0
    %1697 = vmatprep.subr.mxu0 0.0
    %1698 = vmatpush2.msra.mxu0 0.0
    %1699 = vmatprep.subr.mxu0 0.0
    %1700 = vmatpush2.msra.mxu0 0.0
    %1701 = vmatprep.subr.mxu0 0.0
    %1702 = vmatpush2.msra.mxu0 0.0
    %1703 = vmatprep.subr.mxu0 0.0
    %1704 = vmatpush2.msra.mxu0 0.0
    %1705 = vmatprep.subr.mxu0 0.0
    %1706 = vmatpush2.msra.mxu0 0.0
    %1707 = vmatprep.subr.mxu0 0.0
    %1708 = vmatpush2.msra.mxu0 0.0
    %1709 = vmatprep.subr.mxu0 0.0
    %1710 = vmatpush2.msra.mxu0 0.0
    %1711 = vmatprep.subr.mxu0 0.0
    %1712 = vmatpush2.msra.mxu0 0.0
    %1713 = vmatprep.subr.mxu0 0.0
    %1714 = vmatpush2.msra.mxu0 0.0
    %1715 = vmatprep.subr.mxu0 0.0
    %1716 = vmatpush2.msra.mxu0 0.0
    %1717 = vmatprep.subr.mxu0 0.0
    %1718 = vmatpush2.msra.mxu0 0.0
    %1719 = vmatprep.subr.mxu0 0.0
    %1720 = vmatpush2.msra.mxu0 0.0
    %1721 = vmatprep.subr.mxu0 0.0
    %1722 = vmatpush2.msra.mxu0 0.0
    %1723 = vmatprep.subr.mxu0 0.0
    %1724 = vmatpush2.msra.mxu0 0.0
    %1725 = vmatprep.subr.mxu0 0.0
    %1726 = vmatpush2.msra.mxu0 0.0
    %1727 = vmatprep.mubr.f32.mxu0 0.0
    %1728 = vmatmul.mubr.f32.gmra.mxu0 %v1661
    %v1729 = vpop.f32.mrf.mxu0
    %v1730 = vadd.f32 0.0, %v1729
    %v1731 = vpop.f32.mrf.mxu0
    %1732 = vdwg.mxu0
    %v1734 = vsel %vm268, %v1730, 0
    %1736 = vmatprep.subr.mxu0 0.0
    %1737 = vmatpush1.msra.mxu0 0.0
    %1738 = vmatprep.subr.mxu0 0.0
    %1739 = vmatpush1.msra.mxu0 0.0
    %1740 = vmatprep.subr.mxu0 0.0
    %1741 = vmatpush1.msra.mxu0 0.0
    %1742 = vmatprep.subr.mxu0 0.0
    %1743 = vmatpush1.msra.mxu0 0.0
    %1744 = vmatprep.subr.mxu0 0.0
    %1745 = vmatpush1.msra.mxu0 0.0
    %1746 = vmatprep.subr.mxu0 0.0
    %1747 = vmatpush1.msra.mxu0 0.0
    %1748 = vmatprep.subr.mxu0 0.0
    %1749 = vmatpush1.msra.mxu0 0.0
    %1750 = vmatprep.subr.mxu0 0.0
    %1751 = vmatpush1.msra.mxu0 0.0
    %1752 = vmatprep.subr.mxu0 0.0
    %1753 = vmatpush1.msra.mxu0 0.0
    %1754 = vmatprep.subr.mxu0 0.0
    %1755 = vmatpush1.msra.mxu0 0.0
    %1756 = vmatprep.subr.mxu0 0.0
    %1757 = vmatpush1.msra.mxu0 0.0
    %1758 = vmatprep.subr.mxu0 0.0
    %1759 = vmatpush1.msra.mxu0 0.0
    %1760 = vmatprep.subr.mxu0 0.0
    %1761 = vmatpush1.msra.mxu0 %v1364
    %1762 = vmatprep.subr.mxu0 0.0
    %1763 = vmatpush1.msra.mxu0 %v1363
    %1764 = vmatprep.subr.mxu0 0.0
    %1765 = vmatpush1.msra.mxu0 %v1362
    %1766 = vmatprep.subr.mxu0 0.0
    %1767 = vmatpush1.msra.mxu0 %v1361
    %1768 = vmatprep.subr.mxu0 0.0
    %1769 = vmatpush2.msra.mxu0 0.0
    %1770 = vmatprep.subr.mxu0 0.0
    %1771 = vmatpush2.msra.mxu0 0.0
    %1772 = vmatprep.subr.mxu0 0.0
    %1773 = vmatpush2.msra.mxu0 0.0
    %1774 = vmatprep.subr.mxu0 0.0
    %1775 = vmatpush2.msra.mxu0 0.0
    %1776 = vmatprep.subr.mxu0 0.0
    %1777 = vmatpush2.msra.mxu0 0.0
    %1778 = vmatprep.subr.mxu0 0.0
    %1779 = vmatpush2.msra.mxu0 0.0
    %1780 = vmatprep.subr.mxu0 0.0
    %1781 = vmatpush2.msra.mxu0 0.0
    %1782 = vmatprep.subr.mxu0 0.0
    %1783 = vmatpush2.msra.mxu0 0.0
    %1784 = vmatprep.subr.mxu0 0.0
    %1785 = vmatpush2.msra.mxu0 0.0
    %1786 = vmatprep.subr.mxu0 0.0
    %1787 = vmatpush2.msra.mxu0 0.0
    %1788 = vmatprep.subr.mxu0 0.0
    %1789 = vmatpush2.msra.mxu0 0.0
    %1790 = vmatprep.subr.mxu0 0.0
    %1791 = vmatpush2.msra.mxu0 0.0
    %1792 = vmatprep.subr.mxu0 0.0
    %1793 = vmatpush2.msra.mxu0 0.0
    %1794 = vmatprep.subr.mxu0 0.0
    %1795 = vmatpush2.msra.mxu0 0.0
    %1796 = vmatprep.subr.mxu0 0.0
    %1797 = vmatpush2.msra.mxu0 0.0
    %1798 = vmatprep.subr.mxu0 0.0
    %1799 = vmatpush2.msra.mxu0 0.0
    %1800 = vmatprep.mubr.f32.mxu0 0.0
    %1801 = vmatmul.mubr.f32.gmra.mxu0 %v1734
    %v1802 = vpop.f32.mrf.mxu0
    %v1803 = vadd.f32 0.0, %v1802
    %v1804 = vpop.f32.mrf.mxu0
    %1805 = vdwg.mxu0
    %v1806 = vadd.f32 %v1358, %v1803
    %v1807 = vmul.f32 %v44, %v1806
    %v1808 = vtanh.pop %v1807
    %v1809 = vmul.f32 %v44, %v1808
    %v1810 = vadd.f32 %v1809, %v45
    %v1811 = vmul.f32 %v1810, %v1730
    %1813 = vrot.lane.b32.xlu0 %v1810, 64
    %v1814 = vpop.permute.xlu0 %1813
    %v1816 = vmul.f32 %v1810, %v1814
    %1818 = vrot.lane.b32.xlu0 %v1816, 32
    %v1819 = vpop.permute.xlu0 %1818
    %v1821 = vadd.f32 %v1811, %v1819
    %v1822 = vtanh.pop %v1821
    %1824 = vrot.lane.b32.xlu0 %v1822, 64
    %v1825 = vpop.permute.xlu0 %1824
    %v1827 = vmul.f32 %v1810, %v1825
    %vm1828 = vcmask 1045248
    %v1829 = vsel %vm1828, %v1827, 0.0
    %v1830 = vrot.slane %v1829, 4
    %v1831 = vadd.f32 %v1829, %v1830
    %v1832 = vrot.slane %v1831, 2
    %v1833 = vadd.f32 %v1831, %v1832
    %v1834 = vrot.slane %v1833, 1
    %v1835 = vadd.f32 %v1833, %v1834
    %v1836 = vrcp.pop 5.0
    %v1837 = vmul.f32 %v1835, %v1836
    %v1838 = vsub.f32 %v1827, %v1837
    %v1839 = vmul.f32 %v1838, %v1838
    %v1840 = vsel %vm1828, %v1839, 0.0
    %v1841 = vrot.slane %v1840, 4
    %v1842 = vadd.f32 %v1840, %v1841
    %v1843 = vrot.slane %v1842, 2
    %v1844 = vadd.f32 %v1842, %v1843
    %v1845 = vrot.slane %v1844, 1
    %v1846 = vadd.f32 %v1844, %v1845
    %v1847 = vmul.f32 %v1846, %v1836
    %v1848 = vadd.f32 %v1847, 1e-05
    %v1849 = vrsqrt.pop %v1848
    %v1850 = vmul.f32 %v1838, %v1849
    %v1851 = vlaneseq
    %v1852 = vshrl.u32 %v1851, 7
    %v1853 = vsub.s32 5, %v1852
    %v1854 = vrot.slane %v38, %v1853
    %1856 = vrot.lane.b32.xlu0 %v1854, 96
    %v1857 = vpop.permute.xlu0 %1856
    %v1859 = vmul.f32 %v1850, %v1857
    %v1860 = vlaneseq
    %v1861 = vshrl.u32 %v1860, 7
    %v1862 = vsub.s32 6, %v1861
    %v1863 = vrot.slane %v38, %v1862
    %1865 = vrot.lane.b32.xlu0 %v1863, 96
    %v1866 = vpop.permute.xlu0 %1865
    %v1868 = vadd.f32 %v1859, %v1866
    %1870 = vrot.lane.b32.xlu0 %v1868, 32
    %v1871 = vpop.permute.xlu0 %1870
    %vm1873 = vcmask 258048
    %1874 = vst.msk [vmem:[#allocation5] sm:$0x1f] %vm1873, %v1871
    // Predicated region
    $region30: #{e2e_forward.1} parent=1 // pred_check
      _
    $region31: #{e2e_forward.1} parent=1 // pred_check_branch
      %1876 = sbr.rel (0) target = $region33
    $region32: #{e2e_forward.1} parent=1 // pred_region
      %s1878 = ssub.s32 128, 128
      %1879 = vsyncadd [#allocation4], %s1878
      %s1881 = sshll.u32 [#allocation5], 4
      %s1882 = int_to_ptr.vmem [resolvable:$true] %s1881
      %1884 = dma.vmem_to_hbm [thread:$0]  %s1882, 128, %s6, [#allocation4]
    $region33: #{e2e_forward.1} parent=1 // pred_fallthru
      _
    // Predicated region
    $region34: #{e2e_forward.1} parent=1 // pred_check
      _
    $region35: #{e2e_forward.1} parent=1 // pred_check_branch
      %1886 = sbr.rel (0) target = $region37
    $region36: #{e2e_forward.1} parent=1 // pred_region
      %1887 = dma.done [#allocation4], 128
    $region37: #{e2e_forward.1} parent=1 // pred_fallthru
      _
    %1888 = vsyncpa [#allocation3], 1
    %1889 = vsyncpa [#allocation4], 1

</llo_original>
